<compile_context>
chip_gen: v5e
topology: v5e:2x2
jax: 0.10.0
libtpu: 0.0.40
codegen_flags: <defaults>
</compile_context>

<pallas_src>
import jax
import jax.numpy as jnp
import numpy as np
from jax import lax
from jax.experimental import pallas as pl
from jax.experimental.pallas import tpu as pltpu


IMG = 29          # input image height/width (conv1 input is (B, 1, 29, 29))
KH = 10           # conv1 kernel height taps
OH = 20           # real conv1 output rows carried in-kernel (no pad rows)
KDIM = KH * IMG   # 290: Toeplitz contraction dim, index = kh*29 + j
NDIM = 200        # conv matmul output lanes, index = owr*20 + pw*10 + c


def cnn_kernel(x_ref, wbig_ref, bc_ref, w1_ref, b1_ref, w2_ref, b2_ref,
               w3_ref, b3_ref, out_ref):
    tb = x_ref.shape[0]

    # In-kernel row-im2col: X2[b, oh, kh*29 + j] = x[b, oh+kh, j]   (bf16).
    # All 20 oh rows are real image rows (kh+OH <= 29), so no pad rows exist
    # and nothing spurious can leak into the max-pool below.
    xb = x_ref[...].astype(jnp.bfloat16)                                   # (tb, 29, 29)
    x2 = jnp.concatenate([xb[:, kh:kh + OH, :] for kh in range(KH)], axis=-1)
    x2 = x2.reshape(tb * OH, KDIM)                                         # (tb*20, 290)

    # conv1 as a single MXU matmul against the Toeplitz weight (f32 acc,
    # result cast to bf16 to halve the VMEM spill/load traffic of the
    # (tb*20, 200) intermediate before pooling).
    conv = jnp.dot(x2, wbig_ref[...],
                   preferred_element_type=jnp.float32).astype(jnp.bfloat16)

    # MaxPool(10,10): pool the ow direction first -- 9 static 20-lane maxima
    # (lane index = owr*20 + pw*10 + c), pure VPU work hiding under the MXU...
    pooled = conv[:, 0:20]
    for owr in range(1, 10):
        pooled = jnp.maximum(pooled, conv[:, owr * 20:(owr + 1) * 20])     # (tb*20, 20)
    # ...then the oh direction: two small cross-sublane reductions.
    p3 = pooled.reshape(tb, OH, 20)
    ph0 = jnp.max(p3[:, 0:10, :], axis=1)                                  # (tb, 20)
    ph1 = jnp.max(p3[:, 10:20, :], axis=1)                                 # (tb, 20)
    flat40 = jnp.concatenate([ph0, ph1], axis=1)                           # lane = ph*20+pw*10+c
    h = jnp.maximum(flat40 + bc_ref[...], 0.0)                             # conv1 bias + ReLU (f32)

    # Fused FC chain (bf16 operands, f32 accumulation).
    h = jnp.dot(h.astype(jnp.bfloat16), w1_ref[...],
                preferred_element_type=jnp.float32) + b1_ref[...]
    h = jnp.maximum(h, 0.0)                                                # ReLU(fc1)
    h = jnp.dot(h.astype(jnp.bfloat16), w2_ref[...],
                preferred_element_type=jnp.float32) + b2_ref[...]
    h = jnp.maximum(h, 0.0)                                                # ReLU(fc2)
    out_ref[...] = jnp.dot(h.astype(jnp.bfloat16), w3_ref[...],
                           preferred_element_type=jnp.float32) + b3_ref[...]  # fc3


def _toeplitz_conv_weight(conv_w):
    # conv_w: (10, 1, 10, 10) -> (290, 200) with
    # W[kh*29 + j, owr*20 + pw*10 + c] = conv_w[c, 0, kh, j - (pw*10 + owr)],
    # zero when j - ow falls outside [0, 10).
    w = conv_w[:, 0]                                   # (c, kh, kw)
    j = jnp.arange(IMG)
    ow = jnp.arange(20)
    kw = j[:, None] - ow[None, :]                      # (29, 20)
    valid = (kw >= 0) & (kw < KH)
    w4 = w[:, :, jnp.clip(kw, 0, KH - 1)]              # (c, kh, j, ow)
    w4 = jnp.where(valid[None, None], w4, 0.0)
    w4 = w4.reshape(10, KH, IMG, 2, 10)                # (c, kh, j, pw, owr)
    return w4.transpose(1, 2, 4, 3, 0).reshape(KDIM, NDIM).astype(jnp.bfloat16)


def cnn_forward(x, params):
    # x: (B, 1, 29, 29) NCHW float32 -- streamed raw (no host-side im2col).
    B = x.shape[0]
    x2d = x[:, 0]                                                          # (B, 29, 29)

    # Batch tiling: ~256 samples/step at large B (amortizes ~0.35 us/step grid
    # overhead), EVEN step count so v7x's two TensorCores split the parallel
    # grid evenly; small batches run in one or two steps.
    if B >= 512:
        nb = -(-B // 256)
        nb += nb & 1                         # even number of grid steps
        tile_b = 8 * (-(-B // (nb * 8)))
    elif B >= 16:
        tile_b = 8 * ((B + 15) // 16)        # two grid steps
        nb = -(-B // tile_b)
    else:
        tile_b, nb = B, 1
    bpad = nb * tile_b
    if bpad != B:
        x2d = jnp.pad(x2d, ((0, bpad - B), (0, 0), (0, 0)))

    wbig = _toeplitz_conv_weight(params["conv1_w"])                        # (290, 200) bf16
    bc40 = jnp.tile(params["conv1_b"], 4).reshape(1, 40).astype(jnp.float32)
    # fc1 input index j = c*4 + ph*2 + pw; kernel lane index = ph*20 + pw*10 + c.
    w1 = (params["fc1_w"].reshape(50, 10, 2, 2).transpose(2, 3, 1, 0)
          .reshape(40, 50).astype(jnp.bfloat16))
    b1 = params["fc1_b"].reshape(1, 50).astype(jnp.float32)
    w2 = params["fc2_w"].T.astype(jnp.bfloat16)                            # (50, 20)
    b2 = params["fc2_b"].reshape(1, 20).astype(jnp.float32)
    w3 = params["fc3_w"].T.astype(jnp.bfloat16)                            # (20, 2)
    b3 = params["fc3_b"].reshape(1, 2).astype(jnp.float32)

    flops = 2 * bpad * (OH * KDIM * NDIM + 40 * 50 + 50 * 20 + 20 * 2)
    bytes_accessed = (bpad * IMG * IMG * 4                                  # raw image read
                      + (KDIM * NDIM + 40 * 50 + 50 * 20 + 20 * 2) * 2      # bf16 weights
                      + (40 + 50 + 20 + 2) * 4                              # biases
                      + bpad * 2 * 4)                                       # output

    def const(shape):
        n = len(shape)
        return pl.BlockSpec(shape, lambda i, _n=n: (0,) * _n)

    out = pl.pallas_call(
        cnn_kernel,
        out_shape=jax.ShapeDtypeStruct((bpad, 2), jnp.float32),
        grid=(nb,),
        in_specs=[
            pl.BlockSpec((tile_b, IMG, IMG), lambda i: (i, 0, 0)),
            const((KDIM, NDIM)), const((1, 40)),
            const((40, 50)), const((1, 50)),
            const((50, 20)), const((1, 20)),
            const((20, 2)), const((1, 2)),
        ],
        out_specs=pl.BlockSpec((tile_b, 2), lambda i: (i, 0)),
        compiler_params=pltpu.CompilerParams(
            dimension_semantics=("parallel",),
            vmem_limit_bytes=32 * 1024 * 1024),
        cost_estimate=pl.CostEstimate(flops=flops, transcendentals=0,
                                      bytes_accessed=bytes_accessed),
    )(x2d, wbig, bc40, w1, b1, w2, b2, w3, b3)
    return out[:B]


def init_params(key):
    ks = jax.random.split(key, 8)
    p = {}
    p["conv1_w"] = 0.1 * jax.random.normal(ks[0], (10, 1, 10, 10), jnp.float32)
    p["conv1_b"] = 0.1 * jax.random.normal(ks[1], (10,), jnp.float32)
    p["fc1_w"]   = 0.1 * jax.random.normal(ks[2], (50, 40), jnp.float32)
    p["fc1_b"]   = 0.1 * jax.random.normal(ks[3], (50,), jnp.float32)
    p["fc2_w"]   = 0.1 * jax.random.normal(ks[4], (20, 50), jnp.float32)
    p["fc2_b"]   = 0.1 * jax.random.normal(ks[5], (20,), jnp.float32)
    p["fc3_w"]   = 0.1 * jax.random.normal(ks[6], (2, 20), jnp.float32)
    p["fc3_b"]   = 0.1 * jax.random.normal(ks[7], (2,), jnp.float32)
    return p


def cnn_reference(x, p):
    # Independent pure-JAX (f32) reference matching the PyTorch forward.
    y = lax.conv_general_dilated(x, p["conv1_w"], (1, 1), "VALID",
                                 dimension_numbers=("NCHW", "OIHW", "NCHW"))
    y = jnp.maximum(y + p["conv1_b"][None, :, None, None], 0.0)            # (B,10,20,20)
    B = y.shape[0]
    y = y.reshape(B, 10, 2, 10, 2, 10).max(axis=(3, 5))                    # MaxPool2d(10,10)
    y = y.reshape(B, 40)                                                   # flatten(x, 1)
    y = jnp.maximum(y @ p["fc1_w"].T + p["fc1_b"], 0.0)
    y = jnp.maximum(y @ p["fc2_w"].T + p["fc2_b"], 0.0)
    return y @ p["fc3_w"].T + p["fc3_b"]


if __name__ == "__main__":
    key = jax.random.PRNGKey(0)
    pkey, xkey = jax.random.split(key)
    params = init_params(pkey)
    x = jax.random.normal(xkey, (2, 1, 29, 29), jnp.float32)   # NCHW like PyTorch

    out = jax.block_until_ready(jax.jit(cnn_forward)(x, params))
    ref = jax.block_until_ready(cnn_reference(x, params))

    assert out.shape == (2, 2)
    # bf16 compute (f32 accumulation) vs f32 reference -> loosened tolerance.
    np.testing.assert_allclose(np.asarray(out), np.asarray(ref), rtol=5e-2, atol=5e-2)
    print("KERNEL_OK")
</pallas_src>

<mosaic_0001>
module attributes {stable_mosaic.version = 11 : i64} {
  func.func @cnn_kernel(%arg0: i32, %arg1: memref<2x29x29xf32, #tpu.memory_space<vmem>>, %arg2: memref<290x200xbf16, #tpu.memory_space<vmem>>, %arg3: memref<1x40xf32, #tpu.memory_space<vmem>>, %arg4: memref<40x50xbf16, #tpu.memory_space<vmem>>, %arg5: memref<1x50xf32, #tpu.memory_space<vmem>>, %arg6: memref<50x20xbf16, #tpu.memory_space<vmem>>, %arg7: memref<1x20xf32, #tpu.memory_space<vmem>>, %arg8: memref<20x2xbf16, #tpu.memory_space<vmem>>, %arg9: memref<1x2xf32, #tpu.memory_space<vmem>>, %arg10: memref<2x2xf32, #tpu.memory_space<vmem>>) attributes {dimension_semantics = [#tpu.dimension_semantics<parallel>], iteration_bounds = array<i64: 1>, scalar_prefetch = 0 : i64, scratch_operands = 0 : i64, tpu.core_type = #tpu.core_type<tc>, window_params = [{transform_indices = @transform_0, window_bounds = array<i64: 2, 29, 29>}, {pipeline_mode = #tpu.pipeline_mode<synchronous>, transform_indices = @transform_1, window_bounds = array<i64: 290, 200>}, {pipeline_mode = #tpu.pipeline_mode<synchronous>, transform_indices = @transform_2, window_bounds = array<i64: 1, 40>}, {pipeline_mode = #tpu.pipeline_mode<synchronous>, transform_indices = @transform_3, window_bounds = array<i64: 40, 50>}, {pipeline_mode = #tpu.pipeline_mode<synchronous>, transform_indices = @transform_4, window_bounds = array<i64: 1, 50>}, {pipeline_mode = #tpu.pipeline_mode<synchronous>, transform_indices = @transform_5, window_bounds = array<i64: 50, 20>}, {pipeline_mode = #tpu.pipeline_mode<synchronous>, transform_indices = @transform_6, window_bounds = array<i64: 1, 20>}, {pipeline_mode = #tpu.pipeline_mode<synchronous>, transform_indices = @transform_7, window_bounds = array<i64: 20, 2>}, {pipeline_mode = #tpu.pipeline_mode<synchronous>, transform_indices = @transform_8, window_bounds = array<i64: 1, 2>}, {transform_indices = @transform_9, window_bounds = array<i64: 2, 2>}]} {
    %c0 = arith.constant 0 : index
    %c0_0 = arith.constant 0 : index
    %c0_1 = arith.constant 0 : index
    %0 = vector.load %arg1[%c0, %c0_0, %c0_1] : memref<2x29x29xf32, #tpu.memory_space<vmem>>, vector<2x29x29xf32>
    %1 = arith.truncf %0 : vector<2x29x29xf32> to vector<2x29x29xbf16>
    %2 = vector.extract_strided_slice %1 {offsets = [0, 0, 0], sizes = [2, 20, 29], strides = [1, 1, 1]} : vector<2x29x29xbf16> to vector<2x20x29xbf16>
    %3 = vector.extract_strided_slice %1 {offsets = [0, 1, 0], sizes = [2, 20, 29], strides = [1, 1, 1]} : vector<2x29x29xbf16> to vector<2x20x29xbf16>
    %4 = vector.extract_strided_slice %1 {offsets = [0, 2, 0], sizes = [2, 20, 29], strides = [1, 1, 1]} : vector<2x29x29xbf16> to vector<2x20x29xbf16>
    %5 = vector.extract_strided_slice %1 {offsets = [0, 3, 0], sizes = [2, 20, 29], strides = [1, 1, 1]} : vector<2x29x29xbf16> to vector<2x20x29xbf16>
    %6 = vector.extract_strided_slice %1 {offsets = [0, 4, 0], sizes = [2, 20, 29], strides = [1, 1, 1]} : vector<2x29x29xbf16> to vector<2x20x29xbf16>
    %7 = vector.extract_strided_slice %1 {offsets = [0, 5, 0], sizes = [2, 20, 29], strides = [1, 1, 1]} : vector<2x29x29xbf16> to vector<2x20x29xbf16>
    %8 = vector.extract_strided_slice %1 {offsets = [0, 6, 0], sizes = [2, 20, 29], strides = [1, 1, 1]} : vector<2x29x29xbf16> to vector<2x20x29xbf16>
    %9 = vector.extract_strided_slice %1 {offsets = [0, 7, 0], sizes = [2, 20, 29], strides = [1, 1, 1]} : vector<2x29x29xbf16> to vector<2x20x29xbf16>
    %10 = vector.extract_strided_slice %1 {offsets = [0, 8, 0], sizes = [2, 20, 29], strides = [1, 1, 1]} : vector<2x29x29xbf16> to vector<2x20x29xbf16>
    %11 = vector.extract_strided_slice %1 {offsets = [0, 9, 0], sizes = [2, 20, 29], strides = [1, 1, 1]} : vector<2x29x29xbf16> to vector<2x20x29xbf16>
    %12 = tpu.concatenate %2, %3, %4, %5, %6, %7, %8, %9, %10, %11 in 2 : vector<2x20x29xbf16>, vector<2x20x29xbf16>, vector<2x20x29xbf16>, vector<2x20x29xbf16>, vector<2x20x29xbf16>, vector<2x20x29xbf16>, vector<2x20x29xbf16>, vector<2x20x29xbf16>, vector<2x20x29xbf16>, vector<2x20x29xbf16> -> vector<2x20x290xbf16>
    %13 = vector.shape_cast %12 : vector<2x20x290xbf16> to vector<40x290xbf16>
    %c0_2 = arith.constant 0 : index
    %c0_3 = arith.constant 0 : index
    %14 = vector.load %arg2[%c0_2, %c0_3] : memref<290x200xbf16, #tpu.memory_space<vmem>>, vector<290x200xbf16>
    %cst = arith.constant dense<0.000000e+00> : vector<40x200xf32>
    %15 = tpu.matmul %13, %14, %cst {dimension_numbers = #tpu.dot_dimension_numbers<[1], [0], [0], [1], [0, 0, 1, 1], [], []>} : vector<40x290xbf16>, vector<290x200xbf16>, vector<40x200xf32> -> vector<40x200xf32>
    %16 = arith.truncf %15 : vector<40x200xf32> to vector<40x200xbf16>
    %17 = vector.extract_strided_slice %16 {offsets = [0, 0], sizes = [40, 20], strides = [1, 1]} : vector<40x200xbf16> to vector<40x20xbf16>
    %18 = vector.extract_strided_slice %16 {offsets = [0, 20], sizes = [40, 20], strides = [1, 1]} : vector<40x200xbf16> to vector<40x20xbf16>
    %19 = arith.maximumf %17, %18 : vector<40x20xbf16>
    %20 = vector.extract_strided_slice %16 {offsets = [0, 40], sizes = [40, 20], strides = [1, 1]} : vector<40x200xbf16> to vector<40x20xbf16>
    %21 = arith.maximumf %19, %20 : vector<40x20xbf16>
    %22 = vector.extract_strided_slice %16 {offsets = [0, 60], sizes = [40, 20], strides = [1, 1]} : vector<40x200xbf16> to vector<40x20xbf16>
    %23 = arith.maximumf %21, %22 : vector<40x20xbf16>
    %24 = vector.extract_strided_slice %16 {offsets = [0, 80], sizes = [40, 20], strides = [1, 1]} : vector<40x200xbf16> to vector<40x20xbf16>
    %25 = arith.maximumf %23, %24 : vector<40x20xbf16>
    %26 = vector.extract_strided_slice %16 {offsets = [0, 100], sizes = [40, 20], strides = [1, 1]} : vector<40x200xbf16> to vector<40x20xbf16>
    %27 = arith.maximumf %25, %26 : vector<40x20xbf16>
    %28 = vector.extract_strided_slice %16 {offsets = [0, 120], sizes = [40, 20], strides = [1, 1]} : vector<40x200xbf16> to vector<40x20xbf16>
    %29 = arith.maximumf %27, %28 : vector<40x20xbf16>
    %30 = vector.extract_strided_slice %16 {offsets = [0, 140], sizes = [40, 20], strides = [1, 1]} : vector<40x200xbf16> to vector<40x20xbf16>
    %31 = arith.maximumf %29, %30 : vector<40x20xbf16>
    %32 = vector.extract_strided_slice %16 {offsets = [0, 160], sizes = [40, 20], strides = [1, 1]} : vector<40x200xbf16> to vector<40x20xbf16>
    %33 = arith.maximumf %31, %32 : vector<40x20xbf16>
    %34 = vector.extract_strided_slice %16 {offsets = [0, 180], sizes = [40, 20], strides = [1, 1]} : vector<40x200xbf16> to vector<40x20xbf16>
    %35 = arith.maximumf %33, %34 : vector<40x20xbf16>
    %36 = vector.shape_cast %35 : vector<40x20xbf16> to vector<2x20x20xbf16>
    %37 = vector.extract_strided_slice %36 {offsets = [0, 0, 0], sizes = [2, 10, 20], strides = [1, 1, 1]} : vector<2x20x20xbf16> to vector<2x10x20xbf16>
    %cst_4 = arith.constant dense<0xFF80> : vector<2x20xbf16>
    %38 = vector.multi_reduction <maximumf>, %37, %cst_4 [1] : vector<2x10x20xbf16> to vector<2x20xbf16>
    %39 = vector.extract_strided_slice %36 {offsets = [0, 10, 0], sizes = [2, 10, 20], strides = [1, 1, 1]} : vector<2x20x20xbf16> to vector<2x10x20xbf16>
    %cst_5 = arith.constant dense<0xFF80> : vector<2x20xbf16>
    %40 = vector.multi_reduction <maximumf>, %39, %cst_5 [1] : vector<2x10x20xbf16> to vector<2x20xbf16>
    %41 = tpu.concatenate %38, %40 in 1 : vector<2x20xbf16>, vector<2x20xbf16> -> vector<2x40xbf16>
    %c0_6 = arith.constant 0 : index
    %c0_7 = arith.constant 0 : index
    %42 = vector.load %arg3[%c0_6, %c0_7] : memref<1x40xf32, #tpu.memory_space<vmem>>, vector<1x40xf32>
    %43 = arith.extf %41 : vector<2x40xbf16> to vector<2x40xf32>
    %44 = vector.broadcast %42 : vector<1x40xf32> to vector<2x40xf32>
    %45 = arith.addf %43, %44 : vector<2x40xf32>
    %cst_8 = arith.constant 0.000000e+00 : f32
    %46 = vector.broadcast %cst_8 : f32 to vector<2x40xf32>
    %47 = arith.maximumf %45, %46 : vector<2x40xf32>
    %48 = arith.truncf %47 : vector<2x40xf32> to vector<2x40xbf16>
    %c0_9 = arith.constant 0 : index
    %c0_10 = arith.constant 0 : index
    %49 = vector.load %arg4[%c0_9, %c0_10] : memref<40x50xbf16, #tpu.memory_space<vmem>>, vector<40x50xbf16>
    %cst_11 = arith.constant dense<0.000000e+00> : vector<2x50xf32>
    %50 = tpu.matmul %48, %49, %cst_11 {dimension_numbers = #tpu.dot_dimension_numbers<[1], [0], [0], [1], [0, 0, 1, 1], [], []>} : vector<2x40xbf16>, vector<40x50xbf16>, vector<2x50xf32> -> vector<2x50xf32>
    %c0_12 = arith.constant 0 : index
    %c0_13 = arith.constant 0 : index
    %51 = vector.load %arg5[%c0_12, %c0_13] : memref<1x50xf32, #tpu.memory_space<vmem>>, vector<1x50xf32>
    %52 = vector.broadcast %51 : vector<1x50xf32> to vector<2x50xf32>
    %53 = arith.addf %50, %52 : vector<2x50xf32>
    %cst_14 = arith.constant 0.000000e+00 : f32
    %54 = vector.broadcast %cst_14 : f32 to vector<2x50xf32>
    %55 = arith.maximumf %53, %54 : vector<2x50xf32>
    %56 = arith.truncf %55 : vector<2x50xf32> to vector<2x50xbf16>
    %c0_15 = arith.constant 0 : index
    %c0_16 = arith.constant 0 : index
    %57 = vector.load %arg6[%c0_15, %c0_16] : memref<50x20xbf16, #tpu.memory_space<vmem>>, vector<50x20xbf16>
    %cst_17 = arith.constant dense<0.000000e+00> : vector<2x20xf32>
    %58 = tpu.matmul %56, %57, %cst_17 {dimension_numbers = #tpu.dot_dimension_numbers<[1], [0], [0], [1], [0, 0, 1, 1], [], []>} : vector<2x50xbf16>, vector<50x20xbf16>, vector<2x20xf32> -> vector<2x20xf32>
    %c0_18 = arith.constant 0 : index
    %c0_19 = arith.constant 0 : index
    %59 = vector.load %arg7[%c0_18, %c0_19] : memref<1x20xf32, #tpu.memory_space<vmem>>, vector<1x20xf32>
    %60 = vector.broadcast %59 : vector<1x20xf32> to vector<2x20xf32>
    %61 = arith.addf %58, %60 : vector<2x20xf32>
    %cst_20 = arith.constant 0.000000e+00 : f32
    %62 = vector.broadcast %cst_20 : f32 to vector<2x20xf32>
    %63 = arith.maximumf %61, %62 : vector<2x20xf32>
    %64 = arith.truncf %63 : vector<2x20xf32> to vector<2x20xbf16>
    %c0_21 = arith.constant 0 : index
    %c0_22 = arith.constant 0 : index
    %65 = vector.load %arg8[%c0_21, %c0_22] : memref<20x2xbf16, #tpu.memory_space<vmem>>, vector<20x2xbf16>
    %cst_23 = arith.constant dense<0.000000e+00> : vector<2x2xf32>
    %66 = tpu.matmul %64, %65, %cst_23 {dimension_numbers = #tpu.dot_dimension_numbers<[1], [0], [0], [1], [0, 0, 1, 1], [], []>} : vector<2x20xbf16>, vector<20x2xbf16>, vector<2x2xf32> -> vector<2x2xf32>
    %c0_24 = arith.constant 0 : index
    %c0_25 = arith.constant 0 : index
    %67 = vector.load %arg9[%c0_24, %c0_25] : memref<1x2xf32, #tpu.memory_space<vmem>>, vector<1x2xf32>
    %68 = vector.broadcast %67 : vector<1x2xf32> to vector<2x2xf32>
    %69 = arith.addf %66, %68 : vector<2x2xf32>
    %c0_26 = arith.constant 0 : index
    %c0_27 = arith.constant 0 : index
    %70 = vector.load %arg10[%c0_26, %c0_27] : memref<2x2xf32, #tpu.memory_space<vmem>>, vector<2x2xf32>
    tpu.vector_store %arg10[%c0_26, %c0_27], %69 {strides = array<i32>} : memref<2x2xf32, #tpu.memory_space<vmem>>, vector<2x2xf32>,
    return
  }
  func.func @transform_0(%arg0: i32) -> (i32, i32, i32) {
    %c0_i32 = arith.constant 0 : i32
    %c0_i32_0 = arith.constant 0 : i32
    %c0_i32_1 = arith.constant 0 : i32
    return %arg0, %c0_i32, %c0_i32_0 : i32, i32, i32
  }
  func.func @transform_1(%arg0: i32) -> (i32, i32) {
    %c0_i32 = arith.constant 0 : i32
    %c0_i32_0 = arith.constant 0 : i32
    %c0_i32_1 = arith.constant 0 : i32
    return %c0_i32, %c0_i32_0 : i32, i32
  }
  func.func @transform_2(%arg0: i32) -> (i32, i32) {
    %c0_i32 = arith.constant 0 : i32
    %c0_i32_0 = arith.constant 0 : i32
    %c0_i32_1 = arith.constant 0 : i32
    return %c0_i32, %c0_i32_0 : i32, i32
  }
  func.func @transform_3(%arg0: i32) -> (i32, i32) {
    %c0_i32 = arith.constant 0 : i32
    %c0_i32_0 = arith.constant 0 : i32
    %c0_i32_1 = arith.constant 0 : i32
    return %c0_i32, %c0_i32_0 : i32, i32
  }
  func.func @transform_4(%arg0: i32) -> (i32, i32) {
    %c0_i32 = arith.constant 0 : i32
    %c0_i32_0 = arith.constant 0 : i32
    %c0_i32_1 = arith.constant 0 : i32
    return %c0_i32, %c0_i32_0 : i32, i32
  }
  func.func @transform_5(%arg0: i32) -> (i32, i32) {
    %c0_i32 = arith.constant 0 : i32
    %c0_i32_0 = arith.constant 0 : i32
    %c0_i32_1 = arith.constant 0 : i32
    return %c0_i32, %c0_i32_0 : i32, i32
  }
  func.func @transform_6(%arg0: i32) -> (i32, i32) {
    %c0_i32 = arith.constant 0 : i32
    %c0_i32_0 = arith.constant 0 : i32
    %c0_i32_1 = arith.constant 0 : i32
    return %c0_i32, %c0_i32_0 : i32, i32
  }
  func.func @transform_7(%arg0: i32) -> (i32, i32) {
    %c0_i32 = arith.constant 0 : i32
    %c0_i32_0 = arith.constant 0 : i32
    %c0_i32_1 = arith.constant 0 : i32
    return %c0_i32, %c0_i32_0 : i32, i32
  }
  func.func @transform_8(%arg0: i32) -> (i32, i32) {
    %c0_i32 = arith.constant 0 : i32
    %c0_i32_0 = arith.constant 0 : i32
    %c0_i32_1 = arith.constant 0 : i32
    return %c0_i32, %c0_i32_0 : i32, i32
  }
  func.func @transform_9(%arg0: i32) -> (i32, i32) {
    %c0_i32 = arith.constant 0 : i32
    %c0_i32_0 = arith.constant 0 : i32
    return %arg0, %c0_i32 : i32, i32
  }
}

</mosaic_0001>

<llo_original>
// kernel: tile.8
$region0: #{tile.8}
  #allocation0 [shape = 's32[1]{0}', space=sflag, size = 0x4, scoped, tag = 'scoped memory for tile.8']
  %s0 = inlined_call_operand.vmem [shape: f32[10], index: 0, kind: input, shape index: {}]
  %s1 = inlined_call_operand.vmem [shape: f32[4,10], index: 1, kind: output, shape index: {}]
  // Predicated region
  $region2: #{tile.8} parent=0 // pred_check
    _
  $region3: #{tile.8} parent=0 // pred_check_branch
    %3 = sbr.rel (0) target = $region5
  $region4: #{tile.8} parent=0 // pred_region
    _
  $region5: #{tile.8} parent=0 // pred_fallthru
    _
  %v4 = vld [vmem:[%s0] ss:$0 sm:$0xff]
  %5 = vst [vmem:[%s1] sm:$0xf] %v4

// kernel: tile.9
$region0: #{tile.9}
  %s0 = inlined_call_operand.vmem [shape: f32[4,10], index: 0, kind: input, shape index: {}]
  %s1 = inlined_call_operand.vmem [shape: f32[1,40], index: 1, kind: output, shape index: {}]
  $region1: #{tile.9} parent=0
    #allocation0 [shape = 'u8[4096]{0}', space=vmem, size = 0x1000, scoped, tag = 'scoped mem for output reshape']
    #allocation1 [shape = 'u8[4096]{0}', space=vmem, size = 0x1000, scoped, tag = 'scoped mem for input reshape']
    %s3 = ssub.s32 16, 1
    %v4 = vld [vmem:[%s0] sm:%s3]
    %5 = vst [vmem:[#allocation1] sm:%s3] %v4
    %v6 = vld [vmem:[#allocation1] sm:$0x1]
    %vm7 = vcmask 80896
    %8 = vst.msk [vmem:[#allocation0] sm:$0x1] %vm7, %v6
    %s9 = scalar_lea.vmem [#allocation1], 3
    %v10 = vld [vmem:[%s9] sm:$0x1]
    %11 = vrot.lane.b32.xlu0 %v10, 30
    %v12 = vpop.permute.xlu0 %11
    %vm13 = vcmask 326896
    %14 = vst.msk [vmem:[#allocation0] sm:$0x1] %vm13, %v12
    %s15 = scalar_lea.vmem [#allocation1], 2
    %v16 = vld [vmem:[%s15] sm:$0x1]
    %17 = vrot.lane.b32.xlu0 %v16, 20
    %v18 = vpop.permute.xlu0 %17
    %vm19 = vcmask 244896
    %20 = vst.msk [vmem:[#allocation0] sm:$0x1] %vm19, %v18
    %s21 = scalar_lea.vmem [#allocation1], 1
    %v22 = vld [vmem:[%s21] sm:$0x1]
    %23 = vrot.lane.b32.xlu0 %v22, 10
    %v24 = vpop.permute.xlu0 %23
    %vm25 = vcmask 162896
    %26 = vst.msk [vmem:[#allocation0] sm:$0x1] %vm25, %v24
    %s28 = ssub.s32 2, 1
    %v29 = vld [vmem:[#allocation0] sm:%s28]
    %s31 = ssub.s32 2, 1
    %32 = vst [vmem:[%s1] sm:%s31] %v29

// kernel: cnn_forward.1
$region0: #{cnn_forward.1}
  #allocation0 [shape = 'u32[]', space=smem, size = 0x4, offset = 0x4, fixed_abs, tag = 'smem constant byte address 0x4 - core index']
  #allocation1 [shape = 'u32[72,128]{1,0:T(1,128)}', space=vmem, size = 0x9000, scoped, tag = 'internal scratch']
  %s0 = inlined_call_operand.vmem [shape: f32[2,29,29], index: 0, kind: input, shape index: {}]
  %s1 = inlined_call_operand.vmem [shape: bf16[290,200], index: 1, kind: input, shape index: {}]
  %s2 = inlined_call_operand.vmem [shape: f32[1,40], index: 2, kind: input, shape index: {}]
  %s3 = inlined_call_operand.vmem [shape: bf16[40,50], index: 3, kind: input, shape index: {}]
  %s4 = inlined_call_operand.vmem [shape: f32[1,50], index: 4, kind: input, shape index: {}]
  %s5 = inlined_call_operand.vmem [shape: bf16[50,20], index: 5, kind: input, shape index: {}]
  %s6 = inlined_call_operand.vmem [shape: f32[1,20], index: 6, kind: input, shape index: {}]
  %s7 = inlined_call_operand.vmem [shape: bf16[20,2], index: 7, kind: input, shape index: {}]
  %s8 = inlined_call_operand.vmem [shape: f32[1,2], index: 8, kind: input, shape index: {}]
  %s9 = inlined_call_operand.hbm [shape: f32[2,2], index: 9, kind: output, shape index: {}]
  %s10 = sld [smem:[#allocation0]]
  $region46: #{cnn_forward.1} parent=0
    _
  %s12 = ssub.s32 1, %s10
  %s13 = scalar_select 0, %s12, %s10
  $region1: #{cnn_forward.1} parent=0
    #allocation2 [shape = 'u8[1024]{0}', space=vmem, size = 0x400, scoped, tag = 'output window, operand 0, single buffered']
    #allocation3 [shape = 's32[1]{0}', space=sflag, size = 0x4, scoped, tag = 'scoped memory for cnn_forward.1']
    %14 = vsyncpa [#allocation3], 0
    // Predicated region
    $region2: #{cnn_forward.1} parent=1 // pred_check
      _
    $region3: #{cnn_forward.1} parent=1 // pred_check_branch
      %16 = sbr.rel (0) target = $region5
    $region4: #{cnn_forward.1} parent=1 // pred_region
      _
    $region5: #{cnn_forward.1} parent=1 // pred_fallthru
      _
    // Predicated region
    $region6: #{cnn_forward.1} parent=1 // pred_check
      _
    $region7: #{cnn_forward.1} parent=1 // pred_check_branch
      %18 = sbr.rel (0) target = $region9
    $region8: #{cnn_forward.1} parent=1 // pred_region
      _
    $region9: #{cnn_forward.1} parent=1 // pred_fallthru
      _
    // Predicated region
    $region10: #{cnn_forward.1} parent=1 // pred_check
      _
    $region11: #{cnn_forward.1} parent=1 // pred_check_branch
      %20 = sbr.rel (0) target = $region13
    $region12: #{cnn_forward.1} parent=1 // pred_region
      _
    $region13: #{cnn_forward.1} parent=1 // pred_fallthru
      _
    // Predicated region
    $region14: #{cnn_forward.1} parent=1 // pred_check
      _
    $region15: #{cnn_forward.1} parent=1 // pred_check_branch
      %22 = sbr.rel (0) target = $region17
    $region16: #{cnn_forward.1} parent=1 // pred_region
      _
    $region17: #{cnn_forward.1} parent=1 // pred_fallthru
      _
    // Predicated region
    $region18: #{cnn_forward.1} parent=1 // pred_check
      _
    $region19: #{cnn_forward.1} parent=1 // pred_check_branch
      %24 = sbr.rel (0) target = $region21
    $region20: #{cnn_forward.1} parent=1 // pred_region
      _
    $region21: #{cnn_forward.1} parent=1 // pred_fallthru
      _
    // Predicated region
    $region22: #{cnn_forward.1} parent=1 // pred_check
      _
    $region23: #{cnn_forward.1} parent=1 // pred_check_branch
      %26 = sbr.rel (0) target = $region25
    $region24: #{cnn_forward.1} parent=1 // pred_region
      _
    $region25: #{cnn_forward.1} parent=1 // pred_fallthru
      _
    // Predicated region
    $region26: #{cnn_forward.1} parent=1 // pred_check
      _
    $region27: #{cnn_forward.1} parent=1 // pred_check_branch
      %28 = sbr.rel (0) target = $region29
    $region28: #{cnn_forward.1} parent=1 // pred_region
      _
    $region29: #{cnn_forward.1} parent=1 // pred_fallthru
      _
    // Predicated region
    $region30: #{cnn_forward.1} parent=1 // pred_check
      _
    $region31: #{cnn_forward.1} parent=1 // pred_check_branch
      %30 = sbr.rel (0) target = $region33
    $region32: #{cnn_forward.1} parent=1 // pred_region
      _
    $region33: #{cnn_forward.1} parent=1 // pred_fallthru
      _
    // Predicated region
    $region34: #{cnn_forward.1} parent=1 // pred_check
      _
    $region35: #{cnn_forward.1} parent=1 // pred_check_branch
      %32 = sbr.rel (0) target = $region37
    $region36: #{cnn_forward.1} parent=1 // pred_region
      _
    $region37: #{cnn_forward.1} parent=1 // pred_fallthru
      _
    %v34 = vld [vmem:[%s0] sm:$0xff]
    %v35 = vld [vmem:[%s0 + $0x8] sm:$0xff]
    %v36 = vld [vmem:[%s0 + $0x10] sm:$0xff]
    %v37 = vld [vmem:[%s0 + $0x18] sm:$0x1f]
    %v38 = vld [vmem:[%s0 + $0x20] sm:$0xff]
    %v39 = vld [vmem:[%s0 + $0x28] sm:$0xff]
    %v40 = vld [vmem:[%s0 + $0x30] sm:$0xff]
    %v41 = vld [vmem:[%s0 + $0x38] sm:$0x1f]
    %v42 = vpack.c.bf16 %v34, %v34
    %v43 = vpack.c.bf16 %v35, %v35
    %v44 = vpack.c.bf16 %v36, %v36
    %v45 = vpack.c.bf16 %v37, %v37
    %v46 = vpack.c.bf16 %v38, %v38
    %v47 = vpack.c.bf16 %v39, %v39
    %v48 = vpack.c.bf16 %v40, %v40
    %v49 = vpack.c.bf16 %v41, %v41
    %v56 = vunpack.c.l.b16 %v42
    %v57 = vunpack.c.l.b16 %v43
    %v58 = vunpack.c.l.b16 %v44
    %v59 = vunpack.c.l.b16 %v46
    %v60 = vunpack.c.l.b16 %v47
    %v61 = vunpack.c.l.b16 %v48
    %v62 = vpack.c.b16 %v57, %v56
    %v63 = vpack.c.b16 %v58, %v58
    %v64 = vpack.c.b16 %v60, %v59
    %v65 = vpack.c.b16 %v61, %v61
    %vm66 = vsmask.f32 7424
    %v68 = vshrl.u32 %v62, 16
    %v70 = vshll.u32 %v62, 16
    %v72 = vrot.slane %v70, 1
    %v73 = vor.u32 %v68, %v72
    %v75 = vshll.u32 %v63, 16
    %v77 = vrot.slane %v75, 1
    %v78 = vsel %vm66, %v73, %v77
    %v79 = vshrl.u32 %v63, 16
    %v81 = vor.u32 %v79, %v77
    %v83 = vshrl.u32 %v64, 16
    %v85 = vshll.u32 %v64, 16
    %v87 = vrot.slane %v85, 1
    %v88 = vor.u32 %v83, %v87
    %v90 = vshll.u32 %v65, 16
    %v92 = vrot.slane %v90, 1
    %v93 = vsel %vm66, %v88, %v92
    %v94 = vshrl.u32 %v65, 16
    %v96 = vor.u32 %v94, %v92
    %97 = vrot.lane.b32.xlu0 %v78, 29
    %v98 = vpop.permute.xlu0 %97
    %99 = vrot.lane.b32.xlu0 %v81, 29
    %v100 = vpop.permute.xlu0 %99
    %101 = vrot.lane.b32.xlu0 %v93, 29
    %v102 = vpop.permute.xlu0 %101
    %103 = vrot.lane.b32.xlu0 %v96, 29
    %v104 = vpop.permute.xlu0 %103
    %vm105 = vcmask 1046528
    %v106 = vrot.slane %v62, 1
    %v107 = vrot.slane %v63, 1
    %v108 = vsel %vm105, %v106, %v107
    %v109 = vrot.slane %v64, 1
    %v110 = vrot.slane %v65, 1
    %v111 = vsel %vm105, %v109, %v110
    %112 = vrot.lane.b32.xlu0 %v108, 58
    %v113 = vpop.permute.xlu0 %112
    %114 = vrot.lane.b32.xlu0 %v107, 58
    %v115 = vpop.permute.xlu0 %114
    %116 = vrot.lane.b32.xlu0 %v111, 58
    %v117 = vpop.permute.xlu0 %116
    %118 = vrot.lane.b32.xlu0 %v110, 58
    %v119 = vpop.permute.xlu0 %118
    %vm120 = vsmask.f32 6400
    %v121 = vrot.slane %v68, 1
    %v122 = vrot.slane %v70, 2
    %v123 = vor.u32 %v121, %v122
    %v124 = vrot.slane %v79, 1
    %v125 = vrot.slane %v75, 2
    %v126 = vor.u32 %v124, %v125
    %v127 = vsel %vm120, %v123, %v126
    %v128 = vrot.slane %v83, 1
    %v129 = vrot.slane %v85, 2
    %v130 = vor.u32 %v128, %v129
    %v131 = vrot.slane %v94, 1
    %v132 = vrot.slane %v90, 2
    %v133 = vor.u32 %v131, %v132
    %v134 = vsel %vm120, %v130, %v133
    %135 = vrot.lane.b32.xlu0 %v127, 87
    %v136 = vpop.permute.xlu0 %135
    %137 = vrot.lane.b32.xlu0 %v126, 87
    %v138 = vpop.permute.xlu0 %137
    %139 = vrot.lane.b32.xlu0 %v134, 87
    %v140 = vpop.permute.xlu0 %139
    %141 = vrot.lane.b32.xlu0 %v133, 87
    %v142 = vpop.permute.xlu0 %141
    %vm143 = vcmask 1045504
    %v144 = vrot.slane %v62, 2
    %v145 = vrot.slane %v63, 2
    %v146 = vsel %vm143, %v144, %v145
    %v147 = vrot.slane %v64, 2
    %v148 = vrot.slane %v65, 2
    %v149 = vsel %vm143, %v147, %v148
    %150 = vrot.lane.b32.xlu0 %v146, 116
    %v151 = vpop.permute.xlu0 %150
    %152 = vrot.lane.b32.xlu0 %v145, 116
    %v153 = vpop.permute.xlu0 %152
    %154 = vrot.lane.b32.xlu0 %v149, 116
    %v155 = vpop.permute.xlu0 %154
    %156 = vrot.lane.b32.xlu0 %v148, 116
    %v157 = vpop.permute.xlu0 %156
    %v160 = vunpack.c.l.b16 %v45
    %v161 = vunpack.c.l.b16 %v49
    %v162 = vpack.c.b16 %v160, %v58
    %v163 = vpack.c.b16 %v161, %v61
    %vm164 = vsmask.f32 5376
    %v165 = vrot.slane %v68, 2
    %v166 = vrot.slane %v70, 3
    %v167 = vor.u32 %v165, %v166
    %v169 = vshrl.u32 %v162, 16
    %v171 = vrot.slane %v169, 2
    %v172 = vshll.u32 %v162, 16
    %v174 = vrot.slane %v172, 3
    %v175 = vor.u32 %v171, %v174
    %v176 = vsel %vm164, %v167, %v175
    %v177 = vrot.slane %v83, 2
    %v178 = vrot.slane %v85, 3
    %v179 = vor.u32 %v177, %v178
    %v181 = vshrl.u32 %v163, 16
    %v183 = vrot.slane %v181, 2
    %v184 = vshll.u32 %v163, 16
    %v186 = vrot.slane %v184, 3
    %v187 = vor.u32 %v183, %v186
    %v188 = vsel %vm164, %v179, %v187
    %189 = vrot.lane.b32.xlu0 %v176, 17
    %v190 = vpop.permute.xlu0 %189
    %191 = vrot.lane.b32.xlu0 %v175, 17
    %v192 = vpop.permute.xlu0 %191
    %193 = vrot.lane.b32.xlu0 %v188, 17
    %v194 = vpop.permute.xlu0 %193
    %195 = vrot.lane.b32.xlu0 %v187, 17
    %v196 = vpop.permute.xlu0 %195
    %vm197 = vcmask 1044480
    %v198 = vrot.slane %v62, 3
    %v199 = vrot.slane %v162, 3
    %v200 = vsel %vm197, %v198, %v199
    %v201 = vrot.slane %v64, 3
    %v202 = vrot.slane %v163, 3
    %v203 = vsel %vm197, %v201, %v202
    %204 = vrot.lane.b32.xlu0 %v200, 46
    %v205 = vpop.permute.xlu0 %204
    %206 = vrot.lane.b32.xlu0 %v199, 46
    %v207 = vpop.permute.xlu0 %206
    %208 = vrot.lane.b32.xlu0 %v203, 46
    %v209 = vpop.permute.xlu0 %208
    %210 = vrot.lane.b32.xlu0 %v202, 46
    %v211 = vpop.permute.xlu0 %210
    %vm212 = vsmask.f32 4352
    %v213 = vrot.slane %v68, 3
    %v214 = vrot.slane %v70, 4
    %v215 = vor.u32 %v213, %v214
    %v216 = vrot.slane %v169, 3
    %v217 = vrot.slane %v172, 4
    %v218 = vor.u32 %v216, %v217
    %v219 = vsel %vm212, %v215, %v218
    %v220 = vrot.slane %v83, 3
    %v221 = vrot.slane %v85, 4
    %v222 = vor.u32 %v220, %v221
    %v223 = vrot.slane %v181, 3
    %v224 = vrot.slane %v184, 4
    %v225 = vor.u32 %v223, %v224
    %v226 = vsel %vm212, %v222, %v225
    %227 = vrot.lane.b32.xlu0 %v219, 75
    %v228 = vpop.permute.xlu0 %227
    %229 = vrot.lane.b32.xlu0 %v218, 75
    %v230 = vpop.permute.xlu0 %229
    %231 = vrot.lane.b32.xlu0 %v226, 75
    %v232 = vpop.permute.xlu0 %231
    %233 = vrot.lane.b32.xlu0 %v225, 75
    %v234 = vpop.permute.xlu0 %233
    %v235 = vpack.c.b16 %v58, %v57
    %v236 = vpack.c.b16 %v160, %v160
    %v237 = vpack.c.b16 %v61, %v60
    %v238 = vpack.c.b16 %v161, %v161
    %239 = vrot.lane.b32.xlu0 %v235, 104
    %v240 = vpop.permute.xlu0 %239
    %241 = vrot.lane.b32.xlu0 %v236, 104
    %v242 = vpop.permute.xlu0 %241
    %243 = vrot.lane.b32.xlu0 %v237, 104
    %v244 = vpop.permute.xlu0 %243
    %245 = vrot.lane.b32.xlu0 %v238, 104
    %v246 = vpop.permute.xlu0 %245
    %v248 = vshrl.u32 %v235, 16
    %v250 = vshll.u32 %v235, 16
    %v252 = vrot.slane %v250, 1
    %v253 = vor.u32 %v248, %v252
    %v255 = vshll.u32 %v236, 16
    %v257 = vrot.slane %v255, 1
    %v258 = vsel %vm66, %v253, %v257
    %v259 = vshrl.u32 %v236, 16
    %v261 = vor.u32 %v259, %v257
    %v263 = vshrl.u32 %v237, 16
    %v265 = vshll.u32 %v237, 16
    %v267 = vrot.slane %v265, 1
    %v268 = vor.u32 %v263, %v267
    %v270 = vshll.u32 %v238, 16
    %v272 = vrot.slane %v270, 1
    %v273 = vsel %vm66, %v268, %v272
    %v274 = vshrl.u32 %v238, 16
    %v276 = vor.u32 %v274, %v272
    %277 = vrot.lane.b32.xlu0 %v258, 5
    %v278 = vpop.permute.xlu0 %277
    %279 = vrot.lane.b32.xlu0 %v261, 5
    %v280 = vpop.permute.xlu0 %279
    %281 = vrot.lane.b32.xlu0 %v273, 5
    %v282 = vpop.permute.xlu0 %281
    %283 = vrot.lane.b32.xlu0 %v276, 5
    %v284 = vpop.permute.xlu0 %283
    %vm285 = vcmask 236544
    %v287 = vsel %vm285, %v62, %v98
    %v289 = vsel %vm285, %v63, %v100
    %v291 = vsel %vm285, %v64, %v102
    %v293 = vsel %vm285, %v65, %v104
    %vm294 = vcmask 474112
    %v296 = vsel %vm294, %v287, %v113
    %v298 = vsel %vm294, %v289, %v115
    %v300 = vsel %vm294, %v291, %v117
    %v302 = vsel %vm294, %v293, %v119
    %vm303 = vcmask 711680
    %v305 = vsel %vm303, %v296, %v136
    %v307 = vsel %vm303, %v298, %v138
    %v309 = vsel %vm303, %v300, %v140
    %v311 = vsel %vm303, %v302, %v142
    %vm312 = vcmask 949248
    %v314 = vsel %vm312, %v305, %v151
    %v316 = vsel %vm312, %v307, %v153
    %v318 = vsel %vm312, %v309, %v155
    %v320 = vsel %vm312, %v311, %v157
    %vm321 = vcmask 138240
    %v323 = vsel %vm321, %v151, %v190
    %v325 = vsel %vm321, %v153, %v192
    %v327 = vsel %vm321, %v155, %v194
    %v329 = vsel %vm321, %v157, %v196
    %vm330 = vcmask 375808
    %v332 = vsel %vm330, %v323, %v205
    %v334 = vsel %vm330, %v325, %v207
    %v336 = vsel %vm330, %v327, %v209
    %v338 = vsel %vm330, %v329, %v211
    %vm339 = vcmask 613376
    %v341 = vsel %vm339, %v332, %v228
    %v343 = vsel %vm339, %v334, %v230
    %v345 = vsel %vm339, %v336, %v232
    %v347 = vsel %vm339, %v338, %v234
    %vm348 = vcmask 850944
    %v350 = vsel %vm348, %v341, %v240
    %v352 = vsel %vm348, %v343, %v242
    %v354 = vsel %vm348, %v345, %v244
    %v356 = vsel %vm348, %v347, %v246
    %vm357 = vcmask 39936
    %v359 = vsel %vm357, %v240, %v278
    %v361 = vsel %vm357, %v242, %v280
    %v363 = vsel %vm357, %v244, %v282
    %v365 = vsel %vm357, %v246, %v284
    %v374 = vrot.slane %v350, 6
    %v375 = vrot.slane %v359, 4
    %v376 = vrot.slane %v352, 6
    %v377 = vrot.slane %v361, 4
    %v378 = vrot.slane %v354, 6
    %v379 = vrot.slane %v363, 4
    %v380 = vrot.slane %v356, 6
    %v381 = vrot.slane %v365, 4
    %vm382 = vcmask 1041408
    %v384 = vsel %vm382, %v314, %v374
    %vm385 = vcmask 1043456
    %v387 = vsel %vm385, %v384, %v375
    %vm388 = vcmask 1043458
    %v389 = vsel %vm388, %v314, %v374
    %vm390 = vcmask 1045506
    %v391 = vsel %vm390, %v389, %v375
    %v393 = vrot.slane %v391, 2
    %vm394 = vcmask 1045508
    %v395 = vsel %vm394, %v314, %v374
    %v396 = vsel %vm385, %v375, %v395
    %v398 = vrot.slane %v396, 4
    %vm399 = vcmask 1045504
    %v400 = vsel %vm399, %v374, %v314
    %v401 = vsel %vm390, %v375, %v400
    %v403 = vrot.slane %v401, 6
    %v405 = vsel %vm382, %v316, %v376
    %v407 = vsel %vm385, %v405, %v377
    %v409 = vsel %vm382, %v318, %v378
    %v411 = vsel %vm385, %v409, %v379
    %v412 = vsel %vm388, %v318, %v378
    %v413 = vsel %vm390, %v412, %v379
    %v415 = vrot.slane %v413, 2
    %v416 = vsel %vm394, %v318, %v378
    %v417 = vsel %vm385, %v379, %v416
    %v419 = vrot.slane %v417, 4
    %v420 = vsel %vm399, %v378, %v318
    %v421 = vsel %vm390, %v379, %v420
    %v423 = vrot.slane %v421, 6
    %v425 = vsel %vm382, %v320, %v380
    %v427 = vsel %vm385, %v425, %v381
    %v428 = vld [vmem:[%s1] sm:$0xff]
    %v429 = vld [vmem:[%s1 + $0x8] sm:$0xff]
    %v430 = vld [vmem:[%s1 + $0x10] sm:$0xff]
    %v431 = vld [vmem:[%s1 + $0x18] sm:$0xff]
    %v432 = vld [vmem:[%s1 + $0x20] sm:$0xff]
    %v433 = vld [vmem:[%s1 + $0x28] sm:$0xff]
    %v434 = vld [vmem:[%s1 + $0x30] sm:$0xff]
    %v435 = vld [vmem:[%s1 + $0x38] sm:$0xff]
    %v436 = vld [vmem:[%s1 + $0x40] sm:$0xff]
    %v437 = vld [vmem:[%s1 + $0x48] sm:$0xff]
    %v438 = vld [vmem:[%s1 + $0x50] sm:$0xff]
    %v439 = vld [vmem:[%s1 + $0x58] sm:$0xff]
    %v440 = vld [vmem:[%s1 + $0x60] sm:$0xff]
    %v441 = vld [vmem:[%s1 + $0x68] sm:$0xff]
    %v442 = vld [vmem:[%s1 + $0x70] sm:$0xff]
    %v443 = vld [vmem:[%s1 + $0x78] sm:$0xff]
    %v444 = vld [vmem:[%s1 + $0x80] sm:$0xff]
    %v445 = vld [vmem:[%s1 + $0x88] sm:$0xff]
    %v446 = vld [vmem:[%s1 + $0x90] sm:$0xff]
    %v447 = vld [vmem:[%s1 + $0x98] sm:$0xff]
    %v448 = vld [vmem:[%s1 + $0xa0] sm:$0xff]
    %v449 = vld [vmem:[%s1 + $0xa8] sm:$0xff]
    %v450 = vld [vmem:[%s1 + $0xb0] sm:$0xff]
    %v451 = vld [vmem:[%s1 + $0xb8] sm:$0xff]
    %v452 = vld [vmem:[%s1 + $0xc0] sm:$0xff]
    %v453 = vld [vmem:[%s1 + $0xc8] sm:$0xff]
    %v454 = vld [vmem:[%s1 + $0xd0] sm:$0xff]
    %v455 = vld [vmem:[%s1 + $0xd8] sm:$0xff]
    %v456 = vld [vmem:[%s1 + $0xe0] sm:$0xff]
    %v457 = vld [vmem:[%s1 + $0xe8] sm:$0xff]
    %v458 = vld [vmem:[%s1 + $0xf0] sm:$0xff]
    %v459 = vld [vmem:[%s1 + $0xf8] sm:$0xff]
    %v460 = vld [vmem:[%s1 + $0x100] sm:$0xff]
    %v461 = vld [vmem:[%s1 + $0x108] sm:$0xff]
    %v462 = vld [vmem:[%s1 + $0x110] sm:$0xff]
    %v463 = vld [vmem:[%s1 + $0x118] sm:$0xff]
    %v464 = vld [vmem:[%s1 + $0x120] sm:$0x11]
    %465 = vst [vmem:[#allocation1] ss:$4 sm:$0xff] %v387
    %s467 = scalar_lea.vmem [#allocation1], 1
    %468 = vst [vmem:[%s467] ss:$4 sm:$0xff] %v393
    %s470 = scalar_lea.vmem [#allocation1], 2
    %471 = vst [vmem:[%s470] ss:$4 sm:$0xff] %v398
    %s473 = scalar_lea.vmem [#allocation1], 3
    %474 = vst [vmem:[%s473] ss:$4 sm:$0xff] %v403
    %s475 = scalar_lea.vmem [#allocation1], 32
    %476 = vst [vmem:[%s475] ss:$4 sm:$0xff] %v407
    %s477 = scalar_lea.vmem [#allocation1], 33
    %478 = vst [vmem:[%s477] ss:$4 sm:$0xff] %v411
    %s480 = scalar_lea.vmem [#allocation1], 34
    %481 = vst [vmem:[%s480] ss:$4 sm:$0xff] %v415
    %s483 = scalar_lea.vmem [#allocation1], 35
    %484 = vst [vmem:[%s483] ss:$4 sm:$0xff] %v419
    %v485 = vld.sshfl [vmem:[#allocation1] sm:$0xff pattern:$0x73625140]
    %v486 = vld.sshfl [vmem:[#allocation1 + $0x8] sm:$0xff pattern:$0x73625140]
    %v487 = vld.sshfl [vmem:[#allocation1 + $0x10] sm:$0xff pattern:$0x73625140]
    %v488 = vld.sshfl [vmem:[#allocation1 + $0x20] sm:$0xff pattern:$0x73625140]
    %v489 = vld.sshfl [vmem:[#allocation1 + $0x28] sm:$0xff pattern:$0x73625140]
    %v490 = vld.sshfl [vmem:[#allocation1 + $0x30] sm:$0xff pattern:$0x73625140]
    %492 = vst [vmem:[#allocation1] ss:$4 sm:$0xff] %v423
    %493 = vst [vmem:[%s467] ss:$4 sm:$0xff] %v427
    %v494 = vld.sshfl [vmem:[#allocation1] sm:$0xff pattern:$0x73625140]
    %v495 = vld.sshfl [vmem:[#allocation1 + $0x8] sm:$0xff pattern:$0x73625140]
    %v496 = vld.sshfl [vmem:[#allocation1 + $0x10] sm:$0xff pattern:$0x73625140]
    %v540 = vunpack.c.l.b16 %v428
    %v541 = vunpack.c.h.b16 %v428
    %v542 = vunpack.c.l.b16 %v429
    %v543 = vunpack.c.h.b16 %v429
    %v544 = vunpack.c.l.b16 %v430
    %v545 = vunpack.c.h.b16 %v430
    %v546 = vunpack.c.l.b16 %v431
    %v547 = vunpack.c.h.b16 %v431
    %v548 = vunpack.c.l.b16 %v432
    %v549 = vunpack.c.h.b16 %v432
    %v550 = vunpack.c.l.b16 %v433
    %v551 = vunpack.c.h.b16 %v433
    %v552 = vunpack.c.l.b16 %v434
    %v553 = vunpack.c.h.b16 %v434
    %v554 = vunpack.c.l.b16 %v435
    %v555 = vunpack.c.h.b16 %v435
    %v556 = vunpack.c.l.b16 %v436
    %v557 = vunpack.c.h.b16 %v436
    %v558 = vunpack.c.l.b16 %v437
    %v559 = vunpack.c.h.b16 %v437
    %v560 = vunpack.c.l.b16 %v438
    %v561 = vunpack.c.h.b16 %v438
    %v562 = vunpack.c.l.b16 %v439
    %v563 = vunpack.c.h.b16 %v439
    %v564 = vunpack.c.l.b16 %v440
    %v565 = vunpack.c.h.b16 %v440
    %v566 = vunpack.c.l.b16 %v441
    %v567 = vunpack.c.h.b16 %v441
    %v568 = vunpack.c.l.b16 %v442
    %v569 = vunpack.c.h.b16 %v442
    %v570 = vunpack.c.l.b16 %v443
    %v571 = vunpack.c.h.b16 %v443
    %v572 = vunpack.c.l.b16 %v444
    %v573 = vunpack.c.h.b16 %v444
    %v574 = vunpack.c.l.b16 %v445
    %v575 = vunpack.c.h.b16 %v445
    %v576 = vunpack.c.l.b16 %v446
    %v577 = vunpack.c.h.b16 %v446
    %v578 = vunpack.c.l.b16 %v447
    %v579 = vunpack.c.h.b16 %v447
    %v580 = vunpack.c.l.b16 %v448
    %v581 = vunpack.c.h.b16 %v448
    %v582 = vunpack.c.l.b16 %v449
    %v583 = vunpack.c.h.b16 %v449
    %v584 = vunpack.c.l.b16 %v450
    %v585 = vunpack.c.h.b16 %v450
    %v586 = vunpack.c.l.b16 %v451
    %v587 = vunpack.c.h.b16 %v451
    %v588 = vunpack.c.l.b16 %v452
    %v589 = vunpack.c.h.b16 %v452
    %v590 = vunpack.c.l.b16 %v453
    %v591 = vunpack.c.h.b16 %v453
    %v592 = vunpack.c.l.b16 %v454
    %v593 = vunpack.c.h.b16 %v454
    %v594 = vunpack.c.l.b16 %v455
    %v595 = vunpack.c.h.b16 %v455
    %v596 = vunpack.c.l.b16 %v456
    %v597 = vunpack.c.h.b16 %v456
    %v598 = vunpack.c.l.b16 %v457
    %v599 = vunpack.c.h.b16 %v457
    %v600 = vunpack.c.l.b16 %v458
    %v601 = vunpack.c.h.b16 %v458
    %v602 = vunpack.c.l.b16 %v459
    %v603 = vunpack.c.h.b16 %v459
    %v604 = vunpack.c.l.b16 %v460
    %v605 = vunpack.c.h.b16 %v460
    %v606 = vunpack.c.l.b16 %v461
    %v607 = vunpack.c.h.b16 %v461
    %v608 = vunpack.c.l.b16 %v462
    %v609 = vunpack.c.h.b16 %v462
    %v610 = vunpack.c.l.b16 %v463
    %v611 = vunpack.c.h.b16 %v463
    %v612 = vunpack.c.l.b16 %v464
    %v613 = vunpack.c.h.b16 %v464
    %v614 = vpack.c.b16 %v542, %v540
    %v615 = vpack.c.b16 %v543, %v541
    %v616 = vpack.c.b16 %v546, %v544
    %v617 = vpack.c.b16 %v547, %v545
    %v618 = vpack.c.b16 %v550, %v548
    %v619 = vpack.c.b16 %v551, %v549
    %v620 = vpack.c.b16 %v554, %v552
    %v621 = vpack.c.b16 %v555, %v553
    %v622 = vpack.c.b16 %v558, %v556
    %v623 = vpack.c.b16 %v559, %v557
    %v624 = vpack.c.b16 %v562, %v560
    %v625 = vpack.c.b16 %v563, %v561
    %v626 = vpack.c.b16 %v566, %v564
    %v627 = vpack.c.b16 %v567, %v565
    %v628 = vpack.c.b16 %v570, %v568
    %v629 = vpack.c.b16 %v571, %v569
    %v630 = vpack.c.b16 %v574, %v572
    %v631 = vpack.c.b16 %v575, %v573
    %v632 = vpack.c.b16 %v578, %v576
    %v633 = vpack.c.b16 %v579, %v577
    %v634 = vpack.c.b16 %v582, %v580
    %v635 = vpack.c.b16 %v583, %v581
    %v636 = vpack.c.b16 %v586, %v584
    %v637 = vpack.c.b16 %v587, %v585
    %v638 = vpack.c.b16 %v590, %v588
    %v639 = vpack.c.b16 %v591, %v589
    %v640 = vpack.c.b16 %v594, %v592
    %v641 = vpack.c.b16 %v595, %v593
    %v642 = vpack.c.b16 %v598, %v596
    %v643 = vpack.c.b16 %v599, %v597
    %v644 = vpack.c.b16 %v602, %v600
    %v645 = vpack.c.b16 %v603, %v601
    %v646 = vpack.c.b16 %v606, %v604
    %v647 = vpack.c.b16 %v607, %v605
    %v648 = vpack.c.b16 %v610, %v608
    %v649 = vpack.c.b16 %v611, %v609
    %v650 = vpack.c.b16 %v612, %v612
    %v651 = vpack.c.b16 %v613, %v613
    %vm688 = vcmask 277504
    %v689 = vsel %vm688, %v487, 0
    %v691 = vsel %vm688, %v490, 0
    %v693 = vsel %vm688, %v496, 0
    %vm695 = vcmask 1040384
    %v697 = vsel %vm695, %v650, 0
    %v700 = vsel %vm695, %v651, 0
    %702 = vmatpush.bf16.msra.mxu0 %v628
    %703 = vmatpush.bf16.msra.mxu0 %v626
    %704 = vmatpush.bf16.msra.mxu0 %v624
    %705 = vmatpush.bf16.msra.mxu0 %v622
    %706 = vmatpush.bf16.msra.mxu0 %v620
    %707 = vmatpush.bf16.msra.mxu0 %v618
    %708 = vmatpush.bf16.msra.mxu0 %v616
    %709 = vmatpush.bf16.msra.mxu0 %v614
    %710 = vmatmul.bf16.gmra.mxu0 %v485
    %v711 = vpop.f32.mrf.mxu0
    %v712 = vadd.f32 0.0, %v711
    %v713 = vpop.f32.mrf.mxu0
    %v714 = vadd.f32 0.0, %v713
    %715 = vmatmul.bf16.gmra.mxu0 %v488
    %v716 = vpop.f32.mrf.mxu0
    %v717 = vadd.f32 0.0, %v716
    %v718 = vpop.f32.mrf.mxu0
    %v719 = vadd.f32 0.0, %v718
    %720 = vmatmul.bf16.gmra.mxu0 %v494
    %v721 = vpop.f32.mrf.mxu0
    %v722 = vadd.f32 0.0, %v721
    %v723 = vpop.f32.mrf.mxu0
    %724 = vdwg.mxu0
    %725 = vmatpush.bf16.msra.mxu0 %v644
    %726 = vmatpush.bf16.msra.mxu0 %v642
    %727 = vmatpush.bf16.msra.mxu0 %v640
    %728 = vmatpush.bf16.msra.mxu0 %v638
    %729 = vmatpush.bf16.msra.mxu0 %v636
    %730 = vmatpush.bf16.msra.mxu0 %v634
    %731 = vmatpush.bf16.msra.mxu0 %v632
    %732 = vmatpush.bf16.msra.mxu0 %v630
    %733 = vmatmul.bf16.gmra.mxu0 %v486
    %v734 = vpop.f32.mrf.mxu0
    %v735 = vadd.f32 %v712, %v734
    %v736 = vpop.f32.mrf.mxu0
    %v737 = vadd.f32 %v714, %v736
    %738 = vmatmul.bf16.gmra.mxu0 %v489
    %v739 = vpop.f32.mrf.mxu0
    %v740 = vadd.f32 %v717, %v739
    %v741 = vpop.f32.mrf.mxu0
    %v742 = vadd.f32 %v719, %v741
    %743 = vmatmul.bf16.gmra.mxu0 %v495
    %v744 = vpop.f32.mrf.mxu0
    %v745 = vadd.f32 %v722, %v744
    %v746 = vpop.f32.mrf.mxu0
    %747 = vdwg.mxu0
    %748 = vmatpush.bf16.msra.mxu0 0
    %749 = vmatpush.bf16.msra.mxu0 0
    %750 = vmatpush.bf16.msra.mxu0 0
    %751 = vmatpush.bf16.msra.mxu0 0
    %752 = vmatpush.bf16.msra.mxu0 0
    %753 = vmatpush.bf16.msra.mxu0 %v697
    %754 = vmatpush.bf16.msra.mxu0 %v648
    %755 = vmatpush.bf16.msra.mxu0 %v646
    %756 = vmatmul.bf16.gmra.mxu0 %v689
    %v757 = vpop.f32.mrf.mxu0
    %v758 = vadd.f32 %v735, %v757
    %v759 = vpop.f32.mrf.mxu0
    %v760 = vadd.f32 %v737, %v759
    %761 = vmatmul.bf16.gmra.mxu0 %v691
    %v762 = vpop.f32.mrf.mxu0
    %v763 = vadd.f32 %v740, %v762
    %v764 = vpop.f32.mrf.mxu0
    %v765 = vadd.f32 %v742, %v764
    %766 = vmatmul.bf16.gmra.mxu0 %v693
    %v767 = vpop.f32.mrf.mxu0
    %v768 = vadd.f32 %v745, %v767
    %v769 = vpop.f32.mrf.mxu0
    %770 = vdwg.mxu0
    %771 = vmatpush.bf16.msra.mxu0 %v629
    %772 = vmatpush.bf16.msra.mxu0 %v627
    %773 = vmatpush.bf16.msra.mxu0 %v625
    %774 = vmatpush.bf16.msra.mxu0 %v623
    %775 = vmatpush.bf16.msra.mxu0 %v621
    %776 = vmatpush.bf16.msra.mxu0 %v619
    %777 = vmatpush.bf16.msra.mxu0 %v617
    %778 = vmatpush.bf16.msra.mxu0 %v615
    %779 = vmatmul.bf16.gmra.mxu0 %v485
    %v780 = vpop.f32.mrf.mxu0
    %v781 = vadd.f32 0.0, %v780
    %v782 = vpop.f32.mrf.mxu0
    %v783 = vadd.f32 0.0, %v782
    %784 = vmatmul.bf16.gmra.mxu0 %v488
    %v785 = vpop.f32.mrf.mxu0
    %v786 = vadd.f32 0.0, %v785
    %v787 = vpop.f32.mrf.mxu0
    %v788 = vadd.f32 0.0, %v787
    %789 = vmatmul.bf16.gmra.mxu0 %v494
    %v790 = vpop.f32.mrf.mxu0
    %v791 = vadd.f32 0.0, %v790
    %v792 = vpop.f32.mrf.mxu0
    %793 = vdwg.mxu0
    %794 = vmatpush.bf16.msra.mxu0 %v645
    %795 = vmatpush.bf16.msra.mxu0 %v643
    %796 = vmatpush.bf16.msra.mxu0 %v641
    %797 = vmatpush.bf16.msra.mxu0 %v639
    %798 = vmatpush.bf16.msra.mxu0 %v637
    %799 = vmatpush.bf16.msra.mxu0 %v635
    %800 = vmatpush.bf16.msra.mxu0 %v633
    %801 = vmatpush.bf16.msra.mxu0 %v631
    %802 = vmatmul.bf16.gmra.mxu0 %v486
    %v803 = vpop.f32.mrf.mxu0
    %v804 = vadd.f32 %v781, %v803
    %v805 = vpop.f32.mrf.mxu0
    %v806 = vadd.f32 %v783, %v805
    %807 = vmatmul.bf16.gmra.mxu0 %v489
    %v808 = vpop.f32.mrf.mxu0
    %v809 = vadd.f32 %v786, %v808
    %v810 = vpop.f32.mrf.mxu0
    %v811 = vadd.f32 %v788, %v810
    %812 = vmatmul.bf16.gmra.mxu0 %v495
    %v813 = vpop.f32.mrf.mxu0
    %v814 = vadd.f32 %v791, %v813
    %v815 = vpop.f32.mrf.mxu0
    %816 = vdwg.mxu0
    %817 = vmatpush.bf16.msra.mxu0 0
    %818 = vmatpush.bf16.msra.mxu0 0
    %819 = vmatpush.bf16.msra.mxu0 0
    %820 = vmatpush.bf16.msra.mxu0 0
    %821 = vmatpush.bf16.msra.mxu0 0
    %822 = vmatpush.bf16.msra.mxu0 %v700
    %823 = vmatpush.bf16.msra.mxu0 %v649
    %824 = vmatpush.bf16.msra.mxu0 %v647
    %825 = vmatmul.bf16.gmra.mxu0 %v689
    %v826 = vpop.f32.mrf.mxu0
    %v827 = vadd.f32 %v804, %v826
    %v828 = vpop.f32.mrf.mxu0
    %v829 = vadd.f32 %v806, %v828
    %830 = vmatmul.bf16.gmra.mxu0 %v691
    %v831 = vpop.f32.mrf.mxu0
    %v832 = vadd.f32 %v809, %v831
    %v833 = vpop.f32.mrf.mxu0
    %v834 = vadd.f32 %v811, %v833
    %835 = vmatmul.bf16.gmra.mxu0 %v693
    %v836 = vpop.f32.mrf.mxu0
    %v837 = vadd.f32 %v814, %v836
    %v838 = vpop.f32.mrf.mxu0
    %839 = vdwg.mxu0
    %v840 = vpack.c.bf16 %v827, %v758
    %v841 = vpack.c.bf16 %v829, %v760
    %v842 = vpack.c.bf16 %v832, %v763
    %v843 = vpack.c.bf16 %v834, %v765
    %v844 = vpack.c.bf16 %v837, %v768
    %v845 = vunpack.c.l.bf16 %v840
    %v846 = vunpack.c.l.bf16 %v841
    %v847 = vunpack.c.l.bf16 %v842
    %v848 = vunpack.c.l.bf16 %v843
    %v849 = vunpack.c.l.bf16 %v844
    %855 = vrot.lane.b32.xlu0 %v845, 108
    %v856 = vpop.permute.xlu0 %855
    %857 = vrot.lane.b32.xlu0 %v846, 108
    %v858 = vpop.permute.xlu0 %857
    %859 = vrot.lane.b32.xlu0 %v847, 108
    %v860 = vpop.permute.xlu0 %859
    %861 = vrot.lane.b32.xlu0 %v848, 108
    %v862 = vpop.permute.xlu0 %861
    %863 = vrot.lane.b32.xlu0 %v849, 108
    %v864 = vpop.permute.xlu0 %863
    %v870 = vmax.f32 %v845, %v856
    %v871 = vmax.f32 %v846, %v858
    %v872 = vmax.f32 %v847, %v860
    %v873 = vmax.f32 %v848, %v862
    %v874 = vmax.f32 %v849, %v864
    %v875 = vpack.c.bf16 %v870, %v870
    %v876 = vpack.c.bf16 %v871, %v871
    %v877 = vpack.c.bf16 %v872, %v872
    %v878 = vpack.c.bf16 %v873, %v873
    %v879 = vpack.c.bf16 %v874, %v874
    %v880 = vunpack.c.l.bf16 %v875
    %v881 = vunpack.c.l.bf16 %v876
    %v882 = vunpack.c.l.bf16 %v877
    %v883 = vunpack.c.l.bf16 %v878
    %v884 = vunpack.c.l.bf16 %v879
    %885 = vrot.lane.b32.xlu0 %v845, 88
    %v886 = vpop.permute.xlu0 %885
    %887 = vrot.lane.b32.xlu0 %v846, 88
    %v888 = vpop.permute.xlu0 %887
    %889 = vrot.lane.b32.xlu0 %v847, 88
    %v890 = vpop.permute.xlu0 %889
    %891 = vrot.lane.b32.xlu0 %v848, 88
    %v892 = vpop.permute.xlu0 %891
    %893 = vrot.lane.b32.xlu0 %v849, 88
    %v894 = vpop.permute.xlu0 %893
    %v900 = vmax.f32 %v880, %v886
    %v901 = vmax.f32 %v881, %v888
    %v902 = vmax.f32 %v882, %v890
    %v903 = vmax.f32 %v883, %v892
    %v904 = vmax.f32 %v884, %v894
    %v905 = vpack.c.bf16 %v900, %v900
    %v906 = vpack.c.bf16 %v901, %v901
    %v907 = vpack.c.bf16 %v902, %v902
    %v908 = vpack.c.bf16 %v903, %v903
    %v909 = vpack.c.bf16 %v904, %v904
    %v910 = vunpack.c.l.bf16 %v905
    %v911 = vunpack.c.l.bf16 %v906
    %v912 = vunpack.c.l.bf16 %v907
    %v913 = vunpack.c.l.bf16 %v908
    %v914 = vunpack.c.l.bf16 %v909
    %915 = vrot.lane.b32.xlu0 %v845, 68
    %v916 = vpop.permute.xlu0 %915
    %917 = vrot.lane.b32.xlu0 %v846, 68
    %v918 = vpop.permute.xlu0 %917
    %919 = vrot.lane.b32.xlu0 %v847, 68
    %v920 = vpop.permute.xlu0 %919
    %921 = vrot.lane.b32.xlu0 %v848, 68
    %v922 = vpop.permute.xlu0 %921
    %923 = vrot.lane.b32.xlu0 %v849, 68
    %v924 = vpop.permute.xlu0 %923
    %v930 = vmax.f32 %v910, %v916
    %v931 = vmax.f32 %v911, %v918
    %v932 = vmax.f32 %v912, %v920
    %v933 = vmax.f32 %v913, %v922
    %v934 = vmax.f32 %v914, %v924
    %v935 = vpack.c.bf16 %v930, %v930
    %v936 = vpack.c.bf16 %v931, %v931
    %v937 = vpack.c.bf16 %v932, %v932
    %v938 = vpack.c.bf16 %v933, %v933
    %v939 = vpack.c.bf16 %v934, %v934
    %v940 = vunpack.c.l.bf16 %v935
    %v941 = vunpack.c.l.bf16 %v936
    %v942 = vunpack.c.l.bf16 %v937
    %v943 = vunpack.c.l.bf16 %v938
    %v944 = vunpack.c.l.bf16 %v939
    %945 = vrot.lane.b32.xlu0 %v845, 48
    %v946 = vpop.permute.xlu0 %945
    %947 = vrot.lane.b32.xlu0 %v846, 48
    %v948 = vpop.permute.xlu0 %947
    %949 = vrot.lane.b32.xlu0 %v847, 48
    %v950 = vpop.permute.xlu0 %949
    %951 = vrot.lane.b32.xlu0 %v848, 48
    %v952 = vpop.permute.xlu0 %951
    %953 = vrot.lane.b32.xlu0 %v849, 48
    %v954 = vpop.permute.xlu0 %953
    %v960 = vmax.f32 %v940, %v946
    %v961 = vmax.f32 %v941, %v948
    %v962 = vmax.f32 %v942, %v950
    %v963 = vmax.f32 %v943, %v952
    %v964 = vmax.f32 %v944, %v954
    %v965 = vpack.c.bf16 %v960, %v960
    %v966 = vpack.c.bf16 %v961, %v961
    %v967 = vpack.c.bf16 %v962, %v962
    %v968 = vpack.c.bf16 %v963, %v963
    %v969 = vpack.c.bf16 %v964, %v964
    %v970 = vunpack.c.l.bf16 %v965
    %v971 = vunpack.c.l.bf16 %v966
    %v972 = vunpack.c.l.bf16 %v967
    %v973 = vunpack.c.l.bf16 %v968
    %v974 = vunpack.c.l.bf16 %v969
    %975 = vrot.lane.b32.xlu0 %v845, 28
    %v976 = vpop.permute.xlu0 %975
    %977 = vrot.lane.b32.xlu0 %v846, 28
    %v978 = vpop.permute.xlu0 %977
    %979 = vrot.lane.b32.xlu0 %v847, 28
    %v980 = vpop.permute.xlu0 %979
    %981 = vrot.lane.b32.xlu0 %v848, 28
    %v982 = vpop.permute.xlu0 %981
    %983 = vrot.lane.b32.xlu0 %v849, 28
    %v984 = vpop.permute.xlu0 %983
    %v990 = vmax.f32 %v970, %v976
    %v991 = vmax.f32 %v971, %v978
    %v992 = vmax.f32 %v972, %v980
    %v993 = vmax.f32 %v973, %v982
    %v994 = vmax.f32 %v974, %v984
    %v995 = vpack.c.bf16 %v990, %v990
    %v996 = vpack.c.bf16 %v991, %v991
    %v997 = vpack.c.bf16 %v992, %v992
    %v998 = vpack.c.bf16 %v993, %v993
    %v999 = vpack.c.bf16 %v994, %v994
    %v1000 = vunpack.c.l.bf16 %v995
    %v1001 = vunpack.c.l.bf16 %v996
    %v1002 = vunpack.c.l.bf16 %v997
    %v1003 = vunpack.c.l.bf16 %v998
    %v1004 = vunpack.c.l.bf16 %v999
    %v1005 = vunpack.c.h.bf16 %v840
    %v1006 = vunpack.c.h.bf16 %v841
    %v1007 = vunpack.c.h.bf16 %v842
    %v1008 = vunpack.c.h.bf16 %v843
    %v1009 = vunpack.c.h.bf16 %v844
    %1015 = vrot.lane.b32.xlu0 %v845, 8
    %v1016 = vpop.permute.xlu0 %1015
    %1017 = vrot.lane.b32.xlu0 %v1005, 8
    %v1018 = vpop.permute.xlu0 %1017
    %1019 = vrot.lane.b32.xlu0 %v846, 8
    %v1020 = vpop.permute.xlu0 %1019
    %1021 = vrot.lane.b32.xlu0 %v1006, 8
    %v1022 = vpop.permute.xlu0 %1021
    %1023 = vrot.lane.b32.xlu0 %v847, 8
    %v1024 = vpop.permute.xlu0 %1023
    %1025 = vrot.lane.b32.xlu0 %v1007, 8
    %v1026 = vpop.permute.xlu0 %1025
    %1027 = vrot.lane.b32.xlu0 %v848, 8
    %v1028 = vpop.permute.xlu0 %1027
    %1029 = vrot.lane.b32.xlu0 %v1008, 8
    %v1030 = vpop.permute.xlu0 %1029
    %1031 = vrot.lane.b32.xlu0 %v849, 8
    %v1032 = vpop.permute.xlu0 %1031
    %1033 = vrot.lane.b32.xlu0 %v1009, 8
    %v1034 = vpop.permute.xlu0 %1033
    %vm1035 = vcmask 64512
    %v1036 = vsel %vm1035, %v1016, %v1018
    %v1037 = vsel %vm1035, %v1020, %v1022
    %v1038 = vsel %vm1035, %v1024, %v1026
    %v1039 = vsel %vm1035, %v1028, %v1030
    %v1040 = vsel %vm1035, %v1032, %v1034
    %v1046 = vmax.f32 %v1000, %v1036
    %v1047 = vmax.f32 %v1001, %v1037
    %v1048 = vmax.f32 %v1002, %v1038
    %v1049 = vmax.f32 %v1003, %v1039
    %v1050 = vmax.f32 %v1004, %v1040
    %v1051 = vpack.c.bf16 %v1046, %v1046
    %v1052 = vpack.c.bf16 %v1047, %v1047
    %v1053 = vpack.c.bf16 %v1048, %v1048
    %v1054 = vpack.c.bf16 %v1049, %v1049
    %v1055 = vpack.c.bf16 %v1050, %v1050
    %v1056 = vunpack.c.l.bf16 %v1051
    %v1057 = vunpack.c.l.bf16 %v1052
    %v1058 = vunpack.c.l.bf16 %v1053
    %v1059 = vunpack.c.l.bf16 %v1054
    %v1060 = vunpack.c.l.bf16 %v1055
    %1066 = vrot.lane.b32.xlu0 %v840, 116
    %v1067 = vpop.permute.xlu0 %1066
    %1068 = vrot.lane.b32.xlu0 %v841, 116
    %v1069 = vpop.permute.xlu0 %1068
    %1070 = vrot.lane.b32.xlu0 %v842, 116
    %v1071 = vpop.permute.xlu0 %1070
    %1072 = vrot.lane.b32.xlu0 %v843, 116
    %v1073 = vpop.permute.xlu0 %1072
    %1074 = vrot.lane.b32.xlu0 %v844, 116
    %v1075 = vpop.permute.xlu0 %1074
    %v1076 = vrot.slane %v1067, 4
    %v1077 = vrot.slane %v1069, 4
    %v1078 = vrot.slane %v1071, 4
    %v1079 = vrot.slane %v1073, 4
    %v1080 = vrot.slane %v1075, 4
    %v1086 = vunpack.c.l.bf16 %v1076
    %v1087 = vunpack.c.l.bf16 %v1077
    %v1088 = vunpack.c.l.bf16 %v1078
    %v1089 = vunpack.c.l.bf16 %v1079
    %v1090 = vunpack.c.l.bf16 %v1080
    %v1091 = vmax.f32 %v1056, %v1086
    %v1092 = vmax.f32 %v1057, %v1087
    %v1093 = vmax.f32 %v1058, %v1088
    %v1094 = vmax.f32 %v1059, %v1089
    %v1095 = vmax.f32 %v1060, %v1090
    %v1096 = vpack.c.bf16 %v1091, %v1091
    %v1097 = vpack.c.bf16 %v1092, %v1092
    %v1098 = vpack.c.bf16 %v1093, %v1093
    %v1099 = vpack.c.bf16 %v1094, %v1094
    %v1100 = vpack.c.bf16 %v1095, %v1095
    %v1101 = vunpack.c.l.bf16 %v1096
    %v1102 = vunpack.c.l.bf16 %v1097
    %v1103 = vunpack.c.l.bf16 %v1098
    %v1104 = vunpack.c.l.bf16 %v1099
    %v1105 = vunpack.c.l.bf16 %v1100
    %1106 = vrot.lane.b32.xlu0 %v840, 96
    %v1107 = vpop.permute.xlu0 %1106
    %1108 = vrot.lane.b32.xlu0 %v841, 96
    %v1109 = vpop.permute.xlu0 %1108
    %1110 = vrot.lane.b32.xlu0 %v842, 96
    %v1111 = vpop.permute.xlu0 %1110
    %1112 = vrot.lane.b32.xlu0 %v843, 96
    %v1113 = vpop.permute.xlu0 %1112
    %1114 = vrot.lane.b32.xlu0 %v844, 96
    %v1115 = vpop.permute.xlu0 %1114
    %v1116 = vrot.slane %v1107, 4
    %v1117 = vrot.slane %v1109, 4
    %v1118 = vrot.slane %v1111, 4
    %v1119 = vrot.slane %v1113, 4
    %v1120 = vrot.slane %v1115, 4
    %v1126 = vunpack.c.l.bf16 %v1116
    %v1127 = vunpack.c.l.bf16 %v1117
    %v1128 = vunpack.c.l.bf16 %v1118
    %v1129 = vunpack.c.l.bf16 %v1119
    %v1130 = vunpack.c.l.bf16 %v1120
    %v1131 = vmax.f32 %v1101, %v1126
    %v1132 = vmax.f32 %v1102, %v1127
    %v1133 = vmax.f32 %v1103, %v1128
    %v1134 = vmax.f32 %v1104, %v1129
    %v1135 = vmax.f32 %v1105, %v1130
    %v1136 = vpack.c.bf16 %v1131, %v1131
    %v1137 = vpack.c.bf16 %v1132, %v1132
    %v1138 = vpack.c.bf16 %v1133, %v1133
    %v1139 = vpack.c.bf16 %v1134, %v1134
    %v1140 = vpack.c.bf16 %v1135, %v1135
    %v1141 = vunpack.c.l.bf16 %v1136
    %v1142 = vunpack.c.l.bf16 %v1137
    %v1143 = vunpack.c.l.bf16 %v1138
    %v1144 = vunpack.c.l.bf16 %v1139
    %v1145 = vunpack.c.l.bf16 %v1140
    %1146 = vrot.lane.b32.xlu0 %v840, 76
    %v1147 = vpop.permute.xlu0 %1146
    %1148 = vrot.lane.b32.xlu0 %v841, 76
    %v1149 = vpop.permute.xlu0 %1148
    %1150 = vrot.lane.b32.xlu0 %v842, 76
    %v1151 = vpop.permute.xlu0 %1150
    %1152 = vrot.lane.b32.xlu0 %v843, 76
    %v1153 = vpop.permute.xlu0 %1152
    %1154 = vrot.lane.b32.xlu0 %v844, 76
    %v1155 = vpop.permute.xlu0 %1154
    %v1156 = vrot.slane %v1147, 4
    %v1157 = vrot.slane %v1149, 4
    %v1158 = vrot.slane %v1151, 4
    %v1159 = vrot.slane %v1153, 4
    %v1160 = vrot.slane %v1155, 4
    %v1166 = vunpack.c.l.bf16 %v1156
    %v1167 = vunpack.c.l.bf16 %v1157
    %v1168 = vunpack.c.l.bf16 %v1158
    %v1169 = vunpack.c.l.bf16 %v1159
    %v1170 = vunpack.c.l.bf16 %v1160
    %v1171 = vmax.f32 %v1141, %v1166
    %v1172 = vmax.f32 %v1142, %v1167
    %v1173 = vmax.f32 %v1143, %v1168
    %v1174 = vmax.f32 %v1144, %v1169
    %v1175 = vmax.f32 %v1145, %v1170
    %v1176 = vpack.c.bf16 %v1171, %v1171
    %v1177 = vpack.c.bf16 %v1172, %v1172
    %v1178 = vpack.c.bf16 %v1173, %v1173
    %v1179 = vpack.c.bf16 %v1174, %v1174
    %v1180 = vpack.c.bf16 %v1175, %v1175
    %v1186 = vrot.slane %v1176, 2
    %v1187 = vrot.slane %v1177, 2
    %v1188 = vrot.slane %v1178, 2
    %v1189 = vrot.slane %v1179, 2
    %v1190 = vrot.slane %v1180, 2
    %v1193 = vsel %vm382, %v1176, %v1186
    %v1194 = vsel %vm388, %v1176, %v1186
    %v1196 = vrot.slane %v1194, 2
    %v1199 = vsel %vm382, %v1177, %v1187
    %v1200 = vsel %vm388, %v1177, %v1187
    %v1202 = vrot.slane %v1200, 2
    %v1205 = vsel %vm382, %v1178, %v1188
    %v1206 = vsel %vm388, %v1178, %v1188
    %v1208 = vrot.slane %v1206, 2
    %v1211 = vsel %vm382, %v1179, %v1189
    %v1212 = vsel %vm388, %v1179, %v1189
    %v1214 = vrot.slane %v1212, 2
    %v1217 = vsel %vm382, %v1180, %v1190
    %v1218 = vsel %vm388, %v1180, %v1190
    %v1220 = vrot.slane %v1218, 2
    %v1231 = vunpack.c.l.bf16 %v1193
    %v1232 = vunpack.c.l.bf16 %v1196
    %v1233 = vunpack.c.l.bf16 %v1199
    %v1234 = vunpack.c.l.bf16 %v1208
    %v1235 = vunpack.c.l.bf16 %v1211
    %v1236 = vunpack.c.l.bf16 %v1214
    %1243 = vst [vmem:[#allocation1] ss:$2 sm:$0xff] %v1231
    %s1244 = scalar_lea.vmem [#allocation1], 1
    %1245 = vst [vmem:[%s1244] ss:$2 sm:$0xff] %v1232
    %s1246 = scalar_lea.vmem [#allocation1], 16
    %1247 = vst [vmem:[%s1246] ss:$2 sm:$0xff] %v1233
    %v1248 = vld.sshfl [vmem:[#allocation1] sm:$0xff pattern:$0x75316420]
    %v1249 = vld.sshfl [vmem:[#allocation1 + $0x10] sm:$0xff pattern:$0x75316420]
    %s1250 = scalar_lea.vmem [#allocation1], 32
    %1251 = vst [vmem:[%s1250] ss:$2 sm:$0xff] %v1234
    %s1252 = scalar_lea.vmem [#allocation1], 33
    %1253 = vst [vmem:[%s1252] ss:$2 sm:$0xff] %v1235
    %s1254 = scalar_lea.vmem [#allocation1], 48
    %1255 = vst [vmem:[%s1254] ss:$2 sm:$0xff] %v1236
    %v1256 = vld.sshfl [vmem:[#allocation1 + $0x20] sm:$0xff pattern:$0x75316420]
    %v1257 = vld.sshfl [vmem:[#allocation1 + $0x30] sm:$0xff pattern:$0x75316420]
    %vm1262 = vcmask 162816
    %v1263 = vsel %vm1262, %v1248, -inf
    %vm1264 = vcmask 156672
    %v1265 = vsel %vm1264, %v1249, -inf
    %v1266 = vmax.f32 %v1263, %v1265
    %v1267 = vrot.slane %v1266, 4
    %v1268 = vmax.f32 %v1266, %v1267
    %v1269 = vrot.slane %v1268, 2
    %v1270 = vmax.f32 %v1268, %v1269
    %v1271 = vrot.slane %v1270, 1
    %v1272 = vmax.f32 %v1270, %v1271
    %v1273 = vsel %vm1262, %v1256, -inf
    %v1274 = vsel %vm1264, %v1257, -inf
    %v1275 = vmax.f32 %v1273, %v1274
    %v1276 = vrot.slane %v1275, 4
    %v1277 = vmax.f32 %v1275, %v1276
    %v1278 = vrot.slane %v1277, 2
    %v1279 = vmax.f32 %v1277, %v1278
    %v1280 = vrot.slane %v1279, 1
    %v1281 = vmax.f32 %v1279, %v1280
    %v1282 = vpack.c.bf16 %v1272, %v1272
    %v1283 = vpack.c.bf16 %v1281, %v1281
    %v1284 = vunpack.c.l.bf16 %v1202
    %v1285 = vunpack.c.l.bf16 %v1205
    %v1286 = vunpack.c.l.bf16 %v1217
    %v1287 = vunpack.c.l.bf16 %v1220
    %1292 = vst [vmem:[#allocation1] ss:$2 sm:$0xff] %v1233
    %s1293 = scalar_lea.vmem [#allocation1], 1
    %1294 = vst [vmem:[%s1293] ss:$2 sm:$0xff] %v1284
    %s1295 = scalar_lea.vmem [#allocation1], 16
    %1296 = vst [vmem:[%s1295] ss:$2 sm:$0xff] %v1285
    %v1297 = vld.sshfl [vmem:[#allocation1] sm:$0xff pattern:$0x75316420]
    %v1298 = vld.sshfl [vmem:[#allocation1 + $0x10] sm:$0xff pattern:$0x75316420]
    %s1299 = scalar_lea.vmem [#allocation1], 32
    %1300 = vst [vmem:[%s1299] ss:$2 sm:$0xff] %v1236
    %s1301 = scalar_lea.vmem [#allocation1], 33
    %1302 = vst [vmem:[%s1301] ss:$2 sm:$0xff] %v1286
    %s1303 = scalar_lea.vmem [#allocation1], 48
    %1304 = vst [vmem:[%s1303] ss:$2 sm:$0xff] %v1287
    %v1305 = vld.sshfl [vmem:[#allocation1 + $0x20] sm:$0xff pattern:$0x75316420]
    %v1306 = vld.sshfl [vmem:[#allocation1 + $0x30] sm:$0xff pattern:$0x75316420]
    %vm1311 = vcmask 162818
    %v1312 = vsel %vm1311, %v1297, -inf
    %vm1313 = vcmask 158720
    %v1314 = vsel %vm1313, %v1298, -inf
    %v1315 = vmax.f32 %v1312, %v1314
    %v1316 = vrot.slane %v1315, 4
    %v1317 = vmax.f32 %v1315, %v1316
    %v1318 = vrot.slane %v1317, 2
    %v1319 = vmax.f32 %v1317, %v1318
    %v1320 = vrot.slane %v1319, 1
    %v1321 = vmax.f32 %v1319, %v1320
    %v1322 = vsel %vm1311, %v1305, -inf
    %v1323 = vsel %vm1313, %v1306, -inf
    %v1324 = vmax.f32 %v1322, %v1323
    %v1325 = vrot.slane %v1324, 4
    %v1326 = vmax.f32 %v1324, %v1325
    %v1327 = vrot.slane %v1326, 2
    %v1328 = vmax.f32 %v1326, %v1327
    %v1329 = vrot.slane %v1328, 1
    %v1330 = vmax.f32 %v1328, %v1329
    %v1331 = vpack.c.bf16 %v1321, %v1321
    %v1332 = vpack.c.bf16 %v1330, %v1330
    %v1335 = vperm.slane %v1282, 0
    %v1336 = vperm.slane %v1283, 0
    %v1337 = vunpack.c.l.b16 %v1335
    %v1338 = vunpack.c.l.b16 %v1336
    %vm1339 = vcmask 1041409
    %v1340 = vsel %vm1339, %v1338, %v1337
    %v1341 = vpack.c.b16 %v1340, %v1340
    %v1344 = vperm.slane %v1331, 0
    %v1345 = vperm.slane %v1332, 0
    %v1346 = vunpack.c.l.b16 %v1344
    %v1347 = vunpack.c.l.b16 %v1345
    %v1348 = vsel %vm1339, %v1347, %v1346
    %v1349 = vpack.c.b16 %v1348, %v1348
    %1350 = vrot.lane.b32.xlu0 %v1349, 20
    %v1351 = vpop.permute.xlu0 %1350
    %v1354 = vsel %vm1262, %v1341, %v1351
    %v1356 = vld [vmem:[%s2] sm:$0x1]
    %v1357 = vunpack.c.l.bf16 %v1354
    %v1359 = vperm.slane %v1356, 0
    %v1361 = vadd.f32 %v1357, %v1359
    %v1362 = vmax.f32 %v1361, 0.0
    %v1363 = vpack.c.bf16 %v1362, %v1362
    %v1364 = vld [vmem:[%s3] sm:$0xf]
    %v1365 = vld [vmem:[%s3 + $0x4] sm:$0xf]
    %v1366 = vld [vmem:[%s3 + $0x8] sm:$0xf]
    %v1367 = vld [vmem:[%s3 + $0xc] sm:$0xf]
    %v1368 = vld [vmem:[%s3 + $0x10] sm:$0xf]
    %v1369 = vld [vmem:[%s4] sm:$0x1]
    %v1371 = vperm.slane %v1369, 0
    %v1378 = vunpack.c.l.b16 %v1364
    %v1379 = vunpack.c.l.b16 %v1365
    %v1380 = vunpack.c.l.b16 %v1366
    %v1381 = vunpack.c.l.b16 %v1367
    %v1382 = vunpack.c.l.b16 %v1368
    %v1383 = vpack.c.b16 %v1379, %v1378
    %v1384 = vpack.c.b16 %v1381, %v1380
    %v1385 = vpack.c.b16 %v1382, %v1382
    %vm1388 = vcmask 326656
    %v1390 = vsel %vm1388, %v1363, 0
    %v1393 = vsel %vm385, %v1385, 0
    %1395 = vmatpush.bf16.msra.mxu0 0
    %1396 = vmatpush.bf16.msra.mxu0 0
    %1397 = vmatpush.bf16.msra.mxu0 0
    %1398 = vmatpush.bf16.msra.mxu0 0
    %1399 = vmatpush.bf16.msra.mxu0 0
    %1400 = vmatpush.bf16.msra.mxu0 %v1393
    %1401 = vmatpush.bf16.msra.mxu0 %v1384
    %1402 = vmatpush.bf16.msra.mxu0 %v1383
    %1403 = vmatmul.bf16.gmra.mxu0 %v1390
    %v1404 = vpop.f32.mrf.mxu0
    %v1405 = vadd.f32 %v1371, %v1404
    %v1406 = vpop.f32.mrf.mxu0
    %1407 = vdwg.mxu0
    %v1408 = vmax.f32 %v1405, 0.0
    %v1409 = vpack.c.bf16 %v1408, %v1408
    %v1410 = vld [vmem:[%s5] sm:$0xf]
    %v1411 = vld [vmem:[%s5 + $0x4] sm:$0xf]
    %v1412 = vld [vmem:[%s5 + $0x8] sm:$0xf]
    %v1413 = vld [vmem:[%s5 + $0xc] sm:$0xf]
    %v1414 = vld [vmem:[%s5 + $0x10] sm:$0xf]
    %v1415 = vld [vmem:[%s5 + $0x14] sm:$0xf]
    %v1416 = vld [vmem:[%s5 + $0x18] sm:$0x1]
    %v1417 = vld [vmem:[%s6] sm:$0x1]
    %v1419 = vperm.slane %v1417, 0
    %v1428 = vunpack.c.l.b16 %v1410
    %v1429 = vunpack.c.l.b16 %v1411
    %v1430 = vunpack.c.l.b16 %v1412
    %v1431 = vunpack.c.l.b16 %v1413
    %v1432 = vunpack.c.l.b16 %v1414
    %v1433 = vunpack.c.l.b16 %v1415
    %v1434 = vunpack.c.l.b16 %v1416
    %v1435 = vpack.c.b16 %v1429, %v1428
    %v1436 = vpack.c.b16 %v1431, %v1430
    %v1437 = vpack.c.b16 %v1433, %v1432
    %v1438 = vpack.c.b16 %v1434, %v1434
    %vm1442 = vcmask 408576
    %v1444 = vsel %vm1442, %v1409, 0
    %v1447 = vsel %vm695, %v1438, 0
    %1449 = vmatpush.bf16.msra.mxu0 0
    %1450 = vmatpush.bf16.msra.mxu0 0
    %1451 = vmatpush.bf16.msra.mxu0 0
    %1452 = vmatpush.bf16.msra.mxu0 0
    %1453 = vmatpush.bf16.msra.mxu0 %v1447
    %1454 = vmatpush.bf16.msra.mxu0 %v1437
    %1455 = vmatpush.bf16.msra.mxu0 %v1436
    %1456 = vmatpush.bf16.msra.mxu0 %v1435
    %1457 = vmatmul.bf16.gmra.mxu0 %v1444
    %v1458 = vpop.f32.mrf.mxu0
    %v1459 = vadd.f32 %v1419, %v1458
    %v1460 = vpop.f32.mrf.mxu0
    %1461 = vdwg.mxu0
    %v1462 = vmax.f32 %v1459, 0.0
    %v1463 = vpack.c.bf16 %v1462, %v1462
    %v1464 = vld [vmem:[%s7] sm:$0xf]
    %v1465 = vld [vmem:[%s7 + $0x4] sm:$0xf]
    %v1466 = vld [vmem:[%s7 + $0x8] sm:$0x3]
    %v1467 = vld [vmem:[%s8] sm:$0x1]
    %v1469 = vperm.slane %v1467, 0
    %v1474 = vunpack.c.l.b16 %v1464
    %v1475 = vunpack.c.l.b16 %v1465
    %v1476 = vunpack.c.l.b16 %v1466
    %v1477 = vpack.c.b16 %v1475, %v1474
    %v1478 = vpack.c.b16 %v1476, %v1476
    %v1481 = vsel %vm1262, %v1463, 0
    %v1484 = vsel %vm382, %v1478, 0
    %1486 = vmatpush.bf16.msra.mxu0 0
    %1487 = vmatpush.bf16.msra.mxu0 0
    %1488 = vmatpush.bf16.msra.mxu0 0
    %1489 = vmatpush.bf16.msra.mxu0 0
    %1490 = vmatpush.bf16.msra.mxu0 0
    %1491 = vmatpush.bf16.msra.mxu0 0
    %1492 = vmatpush.bf16.msra.mxu0 %v1484
    %1493 = vmatpush.bf16.msra.mxu0 %v1477
    %1494 = vmatmul.bf16.gmra.mxu0 %v1481
    %v1495 = vpop.f32.mrf.mxu0
    %v1496 = vadd.f32 %v1469, %v1495
    %v1497 = vpop.f32.mrf.mxu0
    %1498 = vdwg.mxu0
    %vm1499 = vcmask 9216
    %1500 = vst.msk [vmem:[#allocation2] sm:$0x3] %vm1499, %v1496
    // Predicated region
    $region38: #{cnn_forward.1} parent=1 // pred_check
      _
    $region39: #{cnn_forward.1} parent=1 // pred_check_branch
      %1502 = sbr.rel (0) target = $region41
    $region40: #{cnn_forward.1} parent=1 // pred_region
      %1504 = vsyncadd [#allocation3], 0
      %s1506 = sshll.u32 [#allocation2], 4
      %s1507 = int_to_ptr.vmem [resolvable:$true] %s1506
      %s1508 = sshll.u32 %s9, 4
      %s1509 = int_to_ptr.hbm [resolvable:$true] %s1508
      %1511 = dma.vmem_to_hbm [thread:$0]  %s1507, 32, %s1509, [#allocation3]
    $region41: #{cnn_forward.1} parent=1 // pred_fallthru
      _
    // Predicated region
    $region42: #{cnn_forward.1} parent=1 // pred_check
      _
    $region43: #{cnn_forward.1} parent=1 // pred_check_branch
      %1513 = sbr.rel (0) target = $region45
    $region44: #{cnn_forward.1} parent=1 // pred_region
      %1515 = dma.done [#allocation3], 32
    $region45: #{cnn_forward.1} parent=1 // pred_fallthru
      _
    %1516 = vsyncpa [#allocation3], 1

</llo_original>
